<compile_context>
chip_gen: v7x
topology: tpu7x:2x2x1
jax: 0.10.0
libtpu: 0.0.40
codegen_flags: <defaults>
</compile_context>

<pallas_src>
import functools

import jax
import jax.numpy as jnp
from jax import lax
from jax.experimental import pallas as pl
from jax.experimental.pallas import tpu as pltpu

# ----------------------------- configuration ------------------------------
NUM_LAYERS = 2
D_MODEL = 32
N_HEADS = 4
DIM_FF = 64
NORM_FIRST = True
BATCH = 2
SEQ = 8
EPS = 1e-5


# ------------------------------ Pallas kernel ------------------------------
def _layer_norm(v, w):
    # F.layer_norm over last dim, bias=False, eps=1e-5
    mu = jnp.mean(v, axis=-1, keepdims=True)
    var = jnp.mean((v - mu) ** 2, axis=-1, keepdims=True)
    return (v - mu) * lax.rsqrt(var + EPS) * w


def encoder_kernel(*refs, n_heads, norm_first, mask_ndim):
    # ref order: x, [mask], wqkv, bqkv, wo, bo, ln1, ln2, w1, b1, w2, b2, fln, out
    x_ref = refs[0]
    idx = 1
    mask_ref = None
    if mask_ndim:
        mask_ref = refs[idx]
        idx += 1
    (wqkv, bqkv, wo, bo, ln1, ln2,
     w1, b1, w2, b2, fln, o_ref) = refs[idx:]

    seq, d = x_ref.shape
    dh = d // n_heads
    num_layers = wqkv.shape[0]

    x = x_ref[...].astype(jnp.float32)                       # [S, D]

    if mask_ref is not None:
        m = mask_ref[...].astype(jnp.float32)
        add_mask = m if mask_ndim == 3 else m[None, :, :]    # [H,S,S] / [1,S,S]
    else:
        add_mask = None

    def split_heads(t):                                      # [S, D] -> [H, S, dh]
        return jnp.swapaxes(t.reshape(seq, n_heads, dh), 0, 1)

    def mha(v, l):
        # Fused QKV projection; 1/sqrt(dh) is already folded into the Q block
        # of wqkv / bqkv (one-time transform in pack_params).
        qkv = jnp.dot(v, wqkv[l], preferred_element_type=jnp.float32) + bqkv[l]
        q = split_heads(qkv[:, :d])
        k = split_heads(qkv[:, d:2 * d])
        val = split_heads(qkv[:, 2 * d:])

        s = jnp.einsum("hqd,hkd->hqk", q, k,
                       preferred_element_type=jnp.float32)   # [H, S, S]
        if add_mask is not None:
            s = s + add_mask
        s = s - jnp.max(s, axis=-1, keepdims=True)
        p = jnp.exp(s)
        p = p * pl.reciprocal(jnp.sum(p, axis=-1, keepdims=True), approx=True)
        ctx = jnp.einsum("hqk,hkd->hqd", p, val,
                         preferred_element_type=jnp.float32) # [H, S, dh]
        ctx = jnp.swapaxes(ctx, 0, 1).reshape(seq, d)        # merge heads -> [S, D]
        # TODO(synk): attention dropout omitted (inference-mode identity).
        return jnp.dot(ctx, wo[l], preferred_element_type=jnp.float32) + bo[l]

    def ffn(v, l):
        h = jnp.dot(v, w1[l], preferred_element_type=jnp.float32) + b1[l]
        h = jnp.maximum(h, 0.0)                              # ReLU; dropout = identity
        return jnp.dot(h, w2[l], preferred_element_type=jnp.float32) + b2[l]

    def layer(l, v):                                         # dynamically indexed weights
        if norm_first:
            v = v + mha(_layer_norm(v, ln1[l]), l)
            v = v + ffn(_layer_norm(v, ln2[l]), l)
        else:
            v = _layer_norm(v + mha(v, l), ln1[l])
            v = _layer_norm(v + ffn(v, l), ln2[l])
        return v

    x = lax.fori_loop(0, num_layers, layer, x)

    if norm_first:
        x = _layer_norm(x, fln[...])

    o_ref[...] = x.astype(o_ref.dtype)


# -------------------------------- wrapper -----------------------------------
def transformer_encoder(src, mask, params, *, n_heads, norm_first):
    b, s, d = src.shape
    mask_ndim = 0 if mask is None else mask.ndim

    weight_keys = ("wqkv", "bqkv", "wo", "bo", "ln1", "ln2",
                   "w1", "b1", "w2", "b2", "fln")
    weights = [params[k] for k in weight_keys]

    def const_spec(a):
        r = a.ndim
        return pl.BlockSpec(a.shape, lambda i, _r=r: (0,) * _r)

    in_specs = [pl.BlockSpec((None, s, d), lambda i: (i, 0, 0))]   # per-batch block
    inputs = [src]
    if mask is not None:
        if mask.ndim == 3:
            # PyTorch-style [B*H, S, S] additive mask: per-batch slice of heads.
            in_specs.append(pl.BlockSpec((n_heads, s, s), lambda i: (i, 0, 0)))
        else:
            in_specs.append(const_spec(mask))                     # shared [S, S]
        inputs.append(mask)
    in_specs += [const_spec(w) for w in weights]
    inputs += weights

    kernel = functools.partial(encoder_kernel, n_heads=n_heads,
                               norm_first=norm_first, mask_ndim=mask_ndim)

    return pl.pallas_call(
        kernel,
        out_shape=jax.ShapeDtypeStruct((b, s, d), src.dtype),
        grid=(b,),
        in_specs=in_specs,
        out_specs=pl.BlockSpec((None, s, d), lambda i: (i, 0, 0)),
        compiler_params=pltpu.CompilerParams(
            dimension_semantics=("parallel",)),                   # 2 TCs on v7x
    )(*inputs)


# --------------------------- parameter init --------------------------------
def init_params(key, num_layers, d_model, dim_ff):
    """Raw PyTorch-style parameters (unscaled), stacked along a leading L axis."""
    def linear(k, fan_in, fan_out):
        kw, kb = jax.random.split(k)
        w = jax.random.normal(kw, (fan_in, fan_out), jnp.float32) / jnp.sqrt(fan_in)
        b = jax.random.normal(kb, (1, fan_out), jnp.float32) * 0.02
        return w, b

    names = ("wq", "bq", "wk", "bk", "wv", "bv", "wo", "bo",
             "w1", "b1", "w2", "b2", "ln1", "ln2")
    raw = {k: [] for k in names}
    for _ in range(num_layers):
        key, k1, k2, k3, k4, k5, k6 = jax.random.split(key, 7)
        wq, bq = linear(k1, d_model, d_model)
        wk, bk = linear(k2, d_model, d_model)
        wv, bv = linear(k3, d_model, d_model)
        wo, bo = linear(k4, d_model, d_model)
        w1, b1 = linear(k5, d_model, dim_ff)
        w2, b2 = linear(k6, dim_ff, d_model)
        for name, val in (("wq", wq), ("bq", bq), ("wk", wk), ("bk", bk),
                          ("wv", wv), ("bv", bv), ("wo", wo), ("bo", bo),
                          ("w1", w1), ("b1", b1), ("w2", w2), ("b2", b2)):
            raw[name].append(val)
        raw["ln1"].append(jnp.ones((1, d_model), jnp.float32))
        raw["ln2"].append(jnp.ones((1, d_model), jnp.float32))
    params = {k: jnp.stack(v, axis=0) for k, v in raw.items()}
    params["fln"] = jnp.ones((1, d_model), jnp.float32)
    return params


def pack_params(raw, n_heads):
    """One-time transform of raw params into the kernel layout.
    Fuses Q/K/V into [L, D, 3D] and folds 1/sqrt(dh) into the Q block."""
    d = raw["wq"].shape[-1]
    scale = 1.0 / jnp.sqrt(jnp.float32(d // n_heads))
    packed = {
        "wqkv": jnp.concatenate([raw["wq"] * scale, raw["wk"], raw["wv"]], axis=-1),
        "bqkv": jnp.concatenate([raw["bq"] * scale, raw["bk"], raw["bv"]], axis=-1),
    }
    for k in ("wo", "bo", "ln1", "ln2", "w1", "b1", "w2", "b2", "fln"):
        packed[k] = raw[k]
    return packed


# --------------------------- pure-JAX reference -----------------------------
def reference(src, mask, raw, *, n_heads, norm_first):
    def ln(v, w):
        mu = jnp.mean(v, axis=-1, keepdims=True)
        var = jnp.mean((v - mu) ** 2, axis=-1, keepdims=True)
        return (v - mu) / jnp.sqrt(var + EPS) * w

    b, s, d = src.shape
    dh = d // n_heads
    num_layers = raw["wq"].shape[0]

    def mha(v, l):
        q = (v @ raw["wq"][l] + raw["bq"][l]).reshape(b, s, n_heads, dh)
        k = (v @ raw["wk"][l] + raw["bk"][l]).reshape(b, s, n_heads, dh)
        val = (v @ raw["wv"][l] + raw["bv"][l]).reshape(b, s, n_heads, dh)
        scores = jnp.einsum("bqhd,bkhd->bhqk", q, k) / jnp.sqrt(dh)
        if mask is not None:
            scores = scores + (mask.reshape(b, n_heads, s, s)
                               if mask.ndim == 3 else mask)
        p = jax.nn.softmax(scores, axis=-1)
        o = jnp.einsum("bhqk,bkhd->bqhd", p, val).reshape(b, s, d)
        return o @ raw["wo"][l] + raw["bo"][l]

    def ffn(v, l):
        h = jnp.maximum(v @ raw["w1"][l] + raw["b1"][l], 0.0)
        return h @ raw["w2"][l] + raw["b2"][l]

    x = src
    for l in range(num_layers):
        if norm_first:
            x = x + mha(ln(x, raw["ln1"][l]), l)
            x = x + ffn(ln(x, raw["ln2"][l]), l)
        else:
            x = ln(x + mha(x, l), raw["ln1"][l])
            x = ln(x + ffn(x, l), raw["ln2"][l])
    if norm_first:
        x = ln(x, raw["fln"])
    return x


# ------------------------------- main ---------------------------------------
if __name__ == "__main__":
    key = jax.random.PRNGKey(0)
    k_x, k_p = jax.random.split(key)
    src = jax.random.normal(k_x, (BATCH, SEQ, D_MODEL), jnp.float32)
    raw = init_params(k_p, NUM_LAYERS, D_MODEL, DIM_FF)
    params = pack_params(raw, N_HEADS)

    # 1) attn_mask = None (specialized away at compile time).
    out = transformer_encoder(src, None, params,
                              n_heads=N_HEADS, norm_first=NORM_FIRST)
    out = jax.block_until_ready(out)
    ref = reference(src, None, raw, n_heads=N_HEADS, norm_first=NORM_FIRST)
    assert out.shape == (BATCH, SEQ, D_MODEL)
    assert jnp.allclose(out, ref, atol=2e-2, rtol=2e-2), "mismatch (no mask)"

    # 2) shared 2-D additive causal mask to exercise the mask path.
    causal = jnp.where(jnp.tril(jnp.ones((SEQ, SEQ), jnp.bool_)),
                       0.0, -1e9).astype(jnp.float32)
    out_m = transformer_encoder(src, causal, params,
                                n_heads=N_HEADS, norm_first=NORM_FIRST)
    out_m = jax.block_until_ready(out_m)
    ref_m = reference(src, causal, raw, n_heads=N_HEADS, norm_first=NORM_FIRST)
    assert jnp.allclose(out_m, ref_m, atol=2e-2, rtol=2e-2), "mismatch (causal mask)"

    print("KERNEL_OK")
</pallas_src>

<mosaic_0001>
module attributes {stable_mosaic.version = 11 : i64} {
  func.func @encoder_kernel(%arg0: i32, %arg1: memref<1x8x32xf32, #tpu.memory_space<vmem>>, %arg2: memref<2x32x96xf32, #tpu.memory_space<vmem>>, %arg3: memref<2x1x96xf32, #tpu.memory_space<vmem>>, %arg4: memref<2x32x32xf32, #tpu.memory_space<vmem>>, %arg5: memref<2x1x32xf32, #tpu.memory_space<vmem>>, %arg6: memref<2x1x32xf32, #tpu.memory_space<vmem>>, %arg7: memref<2x1x32xf32, #tpu.memory_space<vmem>>, %arg8: memref<2x32x64xf32, #tpu.memory_space<vmem>>, %arg9: memref<2x1x64xf32, #tpu.memory_space<vmem>>, %arg10: memref<2x64x32xf32, #tpu.memory_space<vmem>>, %arg11: memref<2x1x32xf32, #tpu.memory_space<vmem>>, %arg12: memref<1x32xf32, #tpu.memory_space<vmem>>, %arg13: memref<1x8x32xf32, #tpu.memory_space<vmem>>) attributes {dimension_semantics = [#tpu.dimension_semantics<parallel>], iteration_bounds = array<i64: 2>, scalar_prefetch = 0 : i64, scratch_operands = 0 : i64, tpu.core_type = #tpu.core_type<tc>, window_params = [{transform_indices = @transform_0, window_bounds = array<i64: 1, 8, 32>}, {pipeline_mode = #tpu.pipeline_mode<synchronous>, transform_indices = @transform_1, window_bounds = array<i64: 2, 32, 96>}, {pipeline_mode = #tpu.pipeline_mode<synchronous>, transform_indices = @transform_2, window_bounds = array<i64: 2, 1, 96>}, {pipeline_mode = #tpu.pipeline_mode<synchronous>, transform_indices = @transform_3, window_bounds = array<i64: 2, 32, 32>}, {pipeline_mode = #tpu.pipeline_mode<synchronous>, transform_indices = @transform_4, window_bounds = array<i64: 2, 1, 32>}, {pipeline_mode = #tpu.pipeline_mode<synchronous>, transform_indices = @transform_5, window_bounds = array<i64: 2, 1, 32>}, {pipeline_mode = #tpu.pipeline_mode<synchronous>, transform_indices = @transform_6, window_bounds = array<i64: 2, 1, 32>}, {pipeline_mode = #tpu.pipeline_mode<synchronous>, transform_indices = @transform_7, window_bounds = array<i64: 2, 32, 64>}, {pipeline_mode = #tpu.pipeline_mode<synchronous>, transform_indices = @transform_8, window_bounds = array<i64: 2, 1, 64>}, {pipeline_mode = #tpu.pipeline_mode<synchronous>, transform_indices = @transform_9, window_bounds = array<i64: 2, 64, 32>}, {pipeline_mode = #tpu.pipeline_mode<synchronous>, transform_indices = @transform_10, window_bounds = array<i64: 2, 1, 32>}, {pipeline_mode = #tpu.pipeline_mode<synchronous>, transform_indices = @transform_11, window_bounds = array<i64: 1, 32>}, {transform_indices = @transform_12, window_bounds = array<i64: 1, 8, 32>}]} {
    %c0 = arith.constant 0 : index
    %c0_0 = arith.constant 0 : index
    %c0_1 = arith.constant 0 : index
    %0 = vector.load %arg1[%c0, %c0_0, %c0_1] : memref<1x8x32xf32, #tpu.memory_space<vmem>>, vector<1x8x32xf32>
    %1 = vector.shape_cast %0 : vector<1x8x32xf32> to vector<8x32xf32>
    %c0_i32 = arith.constant 0 : i32
    %c2_i32 = arith.constant 2 : i32
    %2 = arith.addi %c0_i32, %c2_i32 : i32
    %c1_i32 = arith.constant 1 : i32
    %3 = scf.for %arg14 = %c0_i32 to %2 step %c1_i32 iter_args(%arg15 = %1) -> (vector<8x32xf32>)  : i32 {
      %28 = arith.index_cast %arg14 : i32 to index
      %c0_12 = arith.constant 0 : index
      %c0_13 = arith.constant 0 : index
      %29 = vector.load %arg6[%28, %c0_12, %c0_13] : memref<2x1x32xf32, #tpu.memory_space<vmem>>, vector<1x1x32xf32>
      %30 = vector.shape_cast %29 : vector<1x1x32xf32> to vector<1x32xf32>
      %cst_14 = arith.constant dense<0.000000e+00> : vector<8xf32>
      %31 = vector.multi_reduction <add>, %arg15, %cst_14 [1] : vector<8x32xf32> to vector<8xf32>
      %32 = vector.shape_cast %31 : vector<8xf32> to vector<8x1xf32>
      %cst_15 = arith.constant 3.200000e+01 : f32
      %33 = vector.broadcast %cst_15 : f32 to vector<8x1xf32>
      %34 = arith.divf %32, %33 : vector<8x1xf32>
      %35 = vector.broadcast %34 : vector<8x1xf32> to vector<8x32xf32>
      %36 = arith.subf %arg15, %35 : vector<8x32xf32>
      %37 = arith.mulf %36, %36 : vector<8x32xf32>
      %cst_16 = arith.constant dense<0.000000e+00> : vector<8xf32>
      %38 = vector.multi_reduction <add>, %37, %cst_16 [1] : vector<8x32xf32> to vector<8xf32>
      %39 = vector.shape_cast %38 : vector<8xf32> to vector<8x1xf32>
      %cst_17 = arith.constant 3.200000e+01 : f32
      %40 = vector.broadcast %cst_17 : f32 to vector<8x1xf32>
      %41 = arith.divf %39, %40 : vector<8x1xf32>
      %42 = vector.broadcast %34 : vector<8x1xf32> to vector<8x32xf32>
      %43 = arith.subf %arg15, %42 : vector<8x32xf32>
      %cst_18 = arith.constant 9.99999974E-6 : f32
      %44 = vector.broadcast %cst_18 : f32 to vector<8x1xf32>
      %45 = arith.addf %41, %44 : vector<8x1xf32>
      %46 = math.rsqrt %45 : vector<8x1xf32>
      %47 = vector.broadcast %46 : vector<8x1xf32> to vector<8x32xf32>
      %48 = arith.mulf %43, %47 : vector<8x32xf32>
      %49 = vector.broadcast %30 : vector<1x32xf32> to vector<8x32xf32>
      %50 = arith.mulf %48, %49 : vector<8x32xf32>
      %51 = arith.index_cast %arg14 : i32 to index
      %c0_19 = arith.constant 0 : index
      %c0_20 = arith.constant 0 : index
      %52 = vector.load %arg2[%51, %c0_19, %c0_20] : memref<2x32x96xf32, #tpu.memory_space<vmem>>, vector<1x32x96xf32>
      %53 = vector.shape_cast %52 : vector<1x32x96xf32> to vector<32x96xf32>
      %cst_21 = arith.constant dense<0.000000e+00> : vector<8x96xf32>
      %54 = tpu.matmul %50, %53, %cst_21 {dimension_numbers = #tpu.dot_dimension_numbers<[1], [0], [0], [1], [0, 0, 1, 1], [], []>} : vector<8x32xf32>, vector<32x96xf32>, vector<8x96xf32> -> vector<8x96xf32>
      %55 = arith.index_cast %arg14 : i32 to index
      %c0_22 = arith.constant 0 : index
      %c0_23 = arith.constant 0 : index
      %56 = vector.load %arg3[%55, %c0_22, %c0_23] : memref<2x1x96xf32, #tpu.memory_space<vmem>>, vector<1x1x96xf32>
      %57 = vector.shape_cast %56 : vector<1x1x96xf32> to vector<1x96xf32>
      %58 = vector.broadcast %57 : vector<1x96xf32> to vector<8x96xf32>
      %59 = arith.addf %54, %58 : vector<8x96xf32>
      %60 = vector.extract_strided_slice %59 {offsets = [0, 0], sizes = [8, 32], strides = [1, 1]} : vector<8x96xf32> to vector<8x32xf32>
      %61 = vector.shape_cast %60 : vector<8x32xf32> to vector<8x4x8xf32>
      %62 = tpu.transpose %61, [1, 0, 2] : vector<8x4x8xf32> -> vector<4x8x8xf32>
      %63 = vector.extract_strided_slice %59 {offsets = [0, 32], sizes = [8, 32], strides = [1, 1]} : vector<8x96xf32> to vector<8x32xf32>
      %64 = vector.shape_cast %63 : vector<8x32xf32> to vector<8x4x8xf32>
      %65 = tpu.transpose %64, [1, 0, 2] : vector<8x4x8xf32> -> vector<4x8x8xf32>
      %66 = vector.extract_strided_slice %59 {offsets = [0, 64], sizes = [8, 32], strides = [1, 1]} : vector<8x96xf32> to vector<8x32xf32>
      %67 = vector.shape_cast %66 : vector<8x32xf32> to vector<8x4x8xf32>
      %68 = tpu.transpose %67, [1, 0, 2] : vector<8x4x8xf32> -> vector<4x8x8xf32>
      "tpu.trace_start"() <{level = 10 : i32, message = "hqd,hkd->hqk"}> : () -> ()
      %cst_24 = arith.constant dense<0.000000e+00> : vector<4x8x8xf32>
      %69 = tpu.matmul %62, %65, %cst_24 {dimension_numbers = #tpu.dot_dimension_numbers<[2], [2], [1], [1], [0, 0, 0, 1, 1, 1], [0], [0]>} : vector<4x8x8xf32>, vector<4x8x8xf32>, vector<4x8x8xf32> -> vector<4x8x8xf32>
      "tpu.trace_stop"() : () -> ()
      %cst_25 = arith.constant dense<0xFF800000> : vector<4x8xf32>
      %70 = vector.multi_reduction <maximumf>, %69, %cst_25 [2] : vector<4x8x8xf32> to vector<4x8xf32>
      %71 = vector.shape_cast %70 : vector<4x8xf32> to vector<4x8x1xf32>
      %72 = vector.broadcast %71 : vector<4x8x1xf32> to vector<4x8x8xf32>
      %73 = arith.subf %69, %72 : vector<4x8x8xf32>
      %74 = math.exp %73 : vector<4x8x8xf32>
      %cst_26 = arith.constant dense<0.000000e+00> : vector<4x8xf32>
      %75 = vector.multi_reduction <add>, %74, %cst_26 [2] : vector<4x8x8xf32> to vector<4x8xf32>
      %76 = vector.shape_cast %75 : vector<4x8xf32> to vector<4x8x1xf32>
      %77 = tpu.reciprocal %76 {approx = true} : vector<4x8x1xf32> -> vector<4x8x1xf32>
      %78 = vector.broadcast %77 : vector<4x8x1xf32> to vector<4x8x8xf32>
      %79 = arith.mulf %74, %78 : vector<4x8x8xf32>
      "tpu.trace_start"() <{level = 10 : i32, message = "hqk,hkd->hqd"}> : () -> ()
      %cst_27 = arith.constant dense<0.000000e+00> : vector<4x8x8xf32>
      %80 = tpu.matmul %79, %68, %cst_27 {dimension_numbers = #tpu.dot_dimension_numbers<[2], [1], [1], [2], [0, 0, 0, 1, 1, 2], [0], [0]>} : vector<4x8x8xf32>, vector<4x8x8xf32>, vector<4x8x8xf32> -> vector<4x8x8xf32>
      "tpu.trace_stop"() : () -> ()
      %81 = tpu.transpose %80, [1, 0, 2] : vector<4x8x8xf32> -> vector<8x4x8xf32>
      %82 = vector.shape_cast %81 : vector<8x4x8xf32> to vector<8x32xf32>
      %83 = arith.index_cast %arg14 : i32 to index
      %c0_28 = arith.constant 0 : index
      %c0_29 = arith.constant 0 : index
      %84 = vector.load %arg4[%83, %c0_28, %c0_29] : memref<2x32x32xf32, #tpu.memory_space<vmem>>, vector<1x32x32xf32>
      %85 = vector.shape_cast %84 : vector<1x32x32xf32> to vector<32x32xf32>
      %cst_30 = arith.constant dense<0.000000e+00> : vector<8x32xf32>
      %86 = tpu.matmul %82, %85, %cst_30 {dimension_numbers = #tpu.dot_dimension_numbers<[1], [0], [0], [1], [0, 0, 1, 1], [], []>} : vector<8x32xf32>, vector<32x32xf32>, vector<8x32xf32> -> vector<8x32xf32>
      %87 = arith.index_cast %arg14 : i32 to index
      %c0_31 = arith.constant 0 : index
      %c0_32 = arith.constant 0 : index
      %88 = vector.load %arg5[%87, %c0_31, %c0_32] : memref<2x1x32xf32, #tpu.memory_space<vmem>>, vector<1x1x32xf32>
      %89 = vector.shape_cast %88 : vector<1x1x32xf32> to vector<1x32xf32>
      %90 = vector.broadcast %89 : vector<1x32xf32> to vector<8x32xf32>
      %91 = arith.addf %86, %90 : vector<8x32xf32>
      %92 = arith.addf %arg15, %91 : vector<8x32xf32>
      %93 = arith.index_cast %arg14 : i32 to index
      %c0_33 = arith.constant 0 : index
      %c0_34 = arith.constant 0 : index
      %94 = vector.load %arg7[%93, %c0_33, %c0_34] : memref<2x1x32xf32, #tpu.memory_space<vmem>>, vector<1x1x32xf32>
      %95 = vector.shape_cast %94 : vector<1x1x32xf32> to vector<1x32xf32>
      %cst_35 = arith.constant dense<0.000000e+00> : vector<8xf32>
      %96 = vector.multi_reduction <add>, %92, %cst_35 [1] : vector<8x32xf32> to vector<8xf32>
      %97 = vector.shape_cast %96 : vector<8xf32> to vector<8x1xf32>
      %cst_36 = arith.constant 3.200000e+01 : f32
      %98 = vector.broadcast %cst_36 : f32 to vector<8x1xf32>
      %99 = arith.divf %97, %98 : vector<8x1xf32>
      %100 = vector.broadcast %99 : vector<8x1xf32> to vector<8x32xf32>
      %101 = arith.subf %92, %100 : vector<8x32xf32>
      %102 = arith.mulf %101, %101 : vector<8x32xf32>
      %cst_37 = arith.constant dense<0.000000e+00> : vector<8xf32>
      %103 = vector.multi_reduction <add>, %102, %cst_37 [1] : vector<8x32xf32> to vector<8xf32>
      %104 = vector.shape_cast %103 : vector<8xf32> to vector<8x1xf32>
      %cst_38 = arith.constant 3.200000e+01 : f32
      %105 = vector.broadcast %cst_38 : f32 to vector<8x1xf32>
      %106 = arith.divf %104, %105 : vector<8x1xf32>
      %107 = vector.broadcast %99 : vector<8x1xf32> to vector<8x32xf32>
      %108 = arith.subf %92, %107 : vector<8x32xf32>
      %cst_39 = arith.constant 9.99999974E-6 : f32
      %109 = vector.broadcast %cst_39 : f32 to vector<8x1xf32>
      %110 = arith.addf %106, %109 : vector<8x1xf32>
      %111 = math.rsqrt %110 : vector<8x1xf32>
      %112 = vector.broadcast %111 : vector<8x1xf32> to vector<8x32xf32>
      %113 = arith.mulf %108, %112 : vector<8x32xf32>
      %114 = vector.broadcast %95 : vector<1x32xf32> to vector<8x32xf32>
      %115 = arith.mulf %113, %114 : vector<8x32xf32>
      %116 = arith.index_cast %arg14 : i32 to index
      %c0_40 = arith.constant 0 : index
      %c0_41 = arith.constant 0 : index
      %117 = vector.load %arg8[%116, %c0_40, %c0_41] : memref<2x32x64xf32, #tpu.memory_space<vmem>>, vector<1x32x64xf32>
      %118 = vector.shape_cast %117 : vector<1x32x64xf32> to vector<32x64xf32>
      %cst_42 = arith.constant dense<0.000000e+00> : vector<8x64xf32>
      %119 = tpu.matmul %115, %118, %cst_42 {dimension_numbers = #tpu.dot_dimension_numbers<[1], [0], [0], [1], [0, 0, 1, 1], [], []>} : vector<8x32xf32>, vector<32x64xf32>, vector<8x64xf32> -> vector<8x64xf32>
      %120 = arith.index_cast %arg14 : i32 to index
      %c0_43 = arith.constant 0 : index
      %c0_44 = arith.constant 0 : index
      %121 = vector.load %arg9[%120, %c0_43, %c0_44] : memref<2x1x64xf32, #tpu.memory_space<vmem>>, vector<1x1x64xf32>
      %122 = vector.shape_cast %121 : vector<1x1x64xf32> to vector<1x64xf32>
      %123 = vector.broadcast %122 : vector<1x64xf32> to vector<8x64xf32>
      %124 = arith.addf %119, %123 : vector<8x64xf32>
      %cst_45 = arith.constant 0.000000e+00 : f32
      %125 = vector.broadcast %cst_45 : f32 to vector<8x64xf32>
      %126 = arith.maximumf %124, %125 : vector<8x64xf32>
      %127 = arith.index_cast %arg14 : i32 to index
      %c0_46 = arith.constant 0 : index
      %c0_47 = arith.constant 0 : index
      %128 = vector.load %arg10[%127, %c0_46, %c0_47] : memref<2x64x32xf32, #tpu.memory_space<vmem>>, vector<1x64x32xf32>
      %129 = vector.shape_cast %128 : vector<1x64x32xf32> to vector<64x32xf32>
      %cst_48 = arith.constant dense<0.000000e+00> : vector<8x32xf32>
      %130 = tpu.matmul %126, %129, %cst_48 {dimension_numbers = #tpu.dot_dimension_numbers<[1], [0], [0], [1], [0, 0, 1, 1], [], []>} : vector<8x64xf32>, vector<64x32xf32>, vector<8x32xf32> -> vector<8x32xf32>
      %131 = arith.index_cast %arg14 : i32 to index
      %c0_49 = arith.constant 0 : index
      %c0_50 = arith.constant 0 : index
      %132 = vector.load %arg11[%131, %c0_49, %c0_50] : memref<2x1x32xf32, #tpu.memory_space<vmem>>, vector<1x1x32xf32>
      %133 = vector.shape_cast %132 : vector<1x1x32xf32> to vector<1x32xf32>
      %134 = vector.broadcast %133 : vector<1x32xf32> to vector<8x32xf32>
      %135 = arith.addf %130, %134 : vector<8x32xf32>
      %136 = arith.addf %92, %135 : vector<8x32xf32>
      scf.yield %136 : vector<8x32xf32>
    }
    %c2_i32_2 = arith.constant 2 : i32
    %c0_3 = arith.constant 0 : index
    %c0_4 = arith.constant 0 : index
    %4 = vector.load %arg12[%c0_3, %c0_4] : memref<1x32xf32, #tpu.memory_space<vmem>>, vector<1x32xf32>
    %cst = arith.constant dense<0.000000e+00> : vector<8xf32>
    %5 = vector.multi_reduction <add>, %3, %cst [1] : vector<8x32xf32> to vector<8xf32>
    %6 = vector.shape_cast %5 : vector<8xf32> to vector<8x1xf32>
    %cst_5 = arith.constant 3.200000e+01 : f32
    %7 = vector.broadcast %cst_5 : f32 to vector<8x1xf32>
    %8 = arith.divf %6, %7 : vector<8x1xf32>
    %9 = vector.broadcast %8 : vector<8x1xf32> to vector<8x32xf32>
    %10 = arith.subf %3, %9 : vector<8x32xf32>
    %11 = arith.mulf %10, %10 : vector<8x32xf32>
    %cst_6 = arith.constant dense<0.000000e+00> : vector<8xf32>
    %12 = vector.multi_reduction <add>, %11, %cst_6 [1] : vector<8x32xf32> to vector<8xf32>
    %13 = vector.shape_cast %12 : vector<8xf32> to vector<8x1xf32>
    %cst_7 = arith.constant 3.200000e+01 : f32
    %14 = vector.broadcast %cst_7 : f32 to vector<8x1xf32>
    %15 = arith.divf %13, %14 : vector<8x1xf32>
    %16 = vector.broadcast %8 : vector<8x1xf32> to vector<8x32xf32>
    %17 = arith.subf %3, %16 : vector<8x32xf32>
    %cst_8 = arith.constant 9.99999974E-6 : f32
    %18 = vector.broadcast %cst_8 : f32 to vector<8x1xf32>
    %19 = arith.addf %15, %18 : vector<8x1xf32>
    %20 = math.rsqrt %19 : vector<8x1xf32>
    %21 = vector.broadcast %20 : vector<8x1xf32> to vector<8x32xf32>
    %22 = arith.mulf %17, %21 : vector<8x32xf32>
    %23 = vector.broadcast %4 : vector<1x32xf32> to vector<8x32xf32>
    %24 = arith.mulf %22, %23 : vector<8x32xf32>
    %c0_9 = arith.constant 0 : index
    %c0_10 = arith.constant 0 : index
    %c0_11 = arith.constant 0 : index
    %25 = vector.load %arg13[%c0_9, %c0_10, %c0_11] : memref<1x8x32xf32, #tpu.memory_space<vmem>>, vector<1x8x32xf32>
    %26 = vector.shape_cast %25 : vector<1x8x32xf32> to vector<8x32xf32>
    %27 = vector.shape_cast %24 : vector<8x32xf32> to vector<1x8x32xf32>
    tpu.vector_store %arg13[%c0_9, %c0_10, %c0_11], %27 {strides = array<i32>} : memref<1x8x32xf32, #tpu.memory_space<vmem>>, vector<1x8x32xf32>,
    return
  }
  func.func @transform_0(%arg0: i32) -> (i32, i32, i32) {
    %c0_i32 = arith.constant 0 : i32
    %c0_i32_0 = arith.constant 0 : i32
    %c0_i32_1 = arith.constant 0 : i32
    return %arg0, %c0_i32, %c0_i32_0 : i32, i32, i32
  }
  func.func @transform_1(%arg0: i32) -> (i32, i32, i32) {
    %c0_i32 = arith.constant 0 : i32
    %c0_i32_0 = arith.constant 0 : i32
    %c0_i32_1 = arith.constant 0 : i32
    %c0_i32_2 = arith.constant 0 : i32
    return %c0_i32, %c0_i32_0, %c0_i32_1 : i32, i32, i32
  }
  func.func @transform_2(%arg0: i32) -> (i32, i32, i32) {
    %c0_i32 = arith.constant 0 : i32
    %c0_i32_0 = arith.constant 0 : i32
    %c0_i32_1 = arith.constant 0 : i32
    %c0_i32_2 = arith.constant 0 : i32
    return %c0_i32, %c0_i32_0, %c0_i32_1 : i32, i32, i32
  }
  func.func @transform_3(%arg0: i32) -> (i32, i32, i32) {
    %c0_i32 = arith.constant 0 : i32
    %c0_i32_0 = arith.constant 0 : i32
    %c0_i32_1 = arith.constant 0 : i32
    %c0_i32_2 = arith.constant 0 : i32
    return %c0_i32, %c0_i32_0, %c0_i32_1 : i32, i32, i32
  }
  func.func @transform_4(%arg0: i32) -> (i32, i32, i32) {
    %c0_i32 = arith.constant 0 : i32
    %c0_i32_0 = arith.constant 0 : i32
    %c0_i32_1 = arith.constant 0 : i32
    %c0_i32_2 = arith.constant 0 : i32
    return %c0_i32, %c0_i32_0, %c0_i32_1 : i32, i32, i32
  }
  func.func @transform_5(%arg0: i32) -> (i32, i32, i32) {
    %c0_i32 = arith.constant 0 : i32
    %c0_i32_0 = arith.constant 0 : i32
    %c0_i32_1 = arith.constant 0 : i32
    %c0_i32_2 = arith.constant 0 : i32
    return %c0_i32, %c0_i32_0, %c0_i32_1 : i32, i32, i32
  }
  func.func @transform_6(%arg0: i32) -> (i32, i32, i32) {
    %c0_i32 = arith.constant 0 : i32
    %c0_i32_0 = arith.constant 0 : i32
    %c0_i32_1 = arith.constant 0 : i32
    %c0_i32_2 = arith.constant 0 : i32
    return %c0_i32, %c0_i32_0, %c0_i32_1 : i32, i32, i32
  }
  func.func @transform_7(%arg0: i32) -> (i32, i32, i32) {
    %c0_i32 = arith.constant 0 : i32
    %c0_i32_0 = arith.constant 0 : i32
    %c0_i32_1 = arith.constant 0 : i32
    %c0_i32_2 = arith.constant 0 : i32
    return %c0_i32, %c0_i32_0, %c0_i32_1 : i32, i32, i32
  }
  func.func @transform_8(%arg0: i32) -> (i32, i32, i32) {
    %c0_i32 = arith.constant 0 : i32
    %c0_i32_0 = arith.constant 0 : i32
    %c0_i32_1 = arith.constant 0 : i32
    %c0_i32_2 = arith.constant 0 : i32
    return %c0_i32, %c0_i32_0, %c0_i32_1 : i32, i32, i32
  }
  func.func @transform_9(%arg0: i32) -> (i32, i32, i32) {
    %c0_i32 = arith.constant 0 : i32
    %c0_i32_0 = arith.constant 0 : i32
    %c0_i32_1 = arith.constant 0 : i32
    %c0_i32_2 = arith.constant 0 : i32
    return %c0_i32, %c0_i32_0, %c0_i32_1 : i32, i32, i32
  }
  func.func @transform_10(%arg0: i32) -> (i32, i32, i32) {
    %c0_i32 = arith.constant 0 : i32
    %c0_i32_0 = arith.constant 0 : i32
    %c0_i32_1 = arith.constant 0 : i32
    %c0_i32_2 = arith.constant 0 : i32
    return %c0_i32, %c0_i32_0, %c0_i32_1 : i32, i32, i32
  }
  func.func @transform_11(%arg0: i32) -> (i32, i32) {
    %c0_i32 = arith.constant 0 : i32
    %c0_i32_0 = arith.constant 0 : i32
    %c0_i32_1 = arith.constant 0 : i32
    return %c0_i32, %c0_i32_0 : i32, i32
  }
  func.func @transform_12(%arg0: i32) -> (i32, i32, i32) {
    %c0_i32 = arith.constant 0 : i32
    %c0_i32_0 = arith.constant 0 : i32
    %c0_i32_1 = arith.constant 0 : i32
    return %arg0, %c0_i32, %c0_i32_0 : i32, i32, i32
  }
}

</mosaic_0001>

<llo_original>
// kernel: tpu_custom_call.1
$region0: #{tpu_custom_call.1}
  #allocation0 [shape = 'u32[]', space=smem, size = 0x4, offset = 0x4, fixed_abs, tag = 'smem constant byte address 0x4 - core index']
  #allocation1 [shape = 'u32[144,128]{1,0:T(1,128)}', space=vmem, size = 0x12000, scoped, tag = 'internal scratch']
  %s0 = inlined_call_operand.hbm [shape: f32[2,8,32], index: 0, kind: input, shape index: {}]
  %s1 = inlined_call_operand.vmem [shape: f32[2,32,96], index: 1, kind: input, shape index: {}]
  %s2 = inlined_call_operand.vmem [shape: f32[2,1,96], index: 2, kind: input, shape index: {}]
  %s3 = inlined_call_operand.vmem [shape: f32[2,32,32], index: 3, kind: input, shape index: {}]
  %s4 = inlined_call_operand.vmem [shape: f32[2,1,32], index: 4, kind: input, shape index: {}]
  %s5 = inlined_call_operand.vmem [shape: f32[2,1,32], index: 5, kind: input, shape index: {}]
  %s6 = inlined_call_operand.vmem [shape: f32[2,1,32], index: 6, kind: input, shape index: {}]
  %s7 = inlined_call_operand.vmem [shape: f32[2,32,64], index: 7, kind: input, shape index: {}]
  %s8 = inlined_call_operand.vmem [shape: f32[2,1,64], index: 8, kind: input, shape index: {}]
  %s9 = inlined_call_operand.vmem [shape: f32[2,64,32], index: 9, kind: input, shape index: {}]
  %s10 = inlined_call_operand.vmem [shape: f32[2,1,32], index: 10, kind: input, shape index: {}]
  %s11 = inlined_call_operand.vmem [shape: f32[1,32], index: 11, kind: input, shape index: {}]
  %s12 = inlined_call_operand.hbm [shape: f32[2,8,32], index: 12, kind: output, shape index: {}]
  %s13 = sld [smem:[#allocation0]]
  $region92: #{tpu_custom_call.1} parent=0
    _
  %s15 = ssub.s32 1, %s13
  %s16 = scalar_select 0, %s15, %s13
  $region1: #{tpu_custom_call.1} parent=0
    #allocation2 [shape = 'u8[8192]{0}', space=vmem, size = 0x2000, scoped, tag = 'input window, operand 0']
    #allocation3 [shape = 's32[2]{0}', space=sflag, size = 0x8, scoped, tag = 'scoped memory for tpu_custom_call.1']
    #allocation4 [shape = 's32[2]{0}', space=sflag, size = 0x8, scoped, tag = 'scoped memory for tpu_custom_call.1']
    #allocation5 [shape = 'u8[8192]{0}', space=vmem, size = 0x2000, scoped, tag = 'output window, operand 0']
    %17 = vsyncpa [#allocation3], 0
    %s18 = scalar_lea.sflag [#allocation3], 1
    %19 = vsyncpa %s18, 0
    %20 = vsyncpa [#allocation4], 0
    %s21 = scalar_lea.sflag [#allocation4], 1
    %22 = vsyncpa %s21, 0
    loop: start=0, step=1, limit=4
    $region2: #{tpu_custom_call.1} parent=1 // loop_pre_header
      _
    $region3: #{tpu_custom_call.1} parent=1 // loop_header
      %s24 = sphi 0, %s28
      %p25 = scmp.ge.s32.totalorder %s24, 4
      %s34 = sphi 0, %s36
      %s37 = sphi 0, %s34
      %s38 = sphi 0, %s37
      %s54 = sphi 0, %s38
      %s58 = sphi 0, %s58
      %s60 = sphi 0, %s58
      %s61 = sphi 0, %s60
      %s75 = sphi 0, %s61
      %s79 = sphi 0, %s79
      %s81 = sphi 0, %s79
      %s82 = sphi 0, %s81
      %s96 = sphi 0, %s82
      %s100 = sphi 0, %s100
      %s102 = sphi 0, %s100
      %s103 = sphi 0, %s102
      %s117 = sphi 0, %s103
      %s121 = sphi 0, %s121
      %s123 = sphi 0, %s121
      %s124 = sphi 0, %s123
      %s138 = sphi 0, %s124
      %s142 = sphi 0, %s142
      %s144 = sphi 0, %s142
      %s145 = sphi 0, %s144
      %s159 = sphi 0, %s145
      %s163 = sphi 0, %s163
      %s165 = sphi 0, %s163
      %s166 = sphi 0, %s165
      %s180 = sphi 0, %s166
      %s184 = sphi 0, %s184
      %s186 = sphi 0, %s184
      %s187 = sphi 0, %s186
      %s201 = sphi 0, %s187
      %s205 = sphi 0, %s205
      %s207 = sphi 0, %s205
      %s208 = sphi 0, %s207
      %s222 = sphi 0, %s208
      %s226 = sphi 0, %s226
      %s228 = sphi 0, %s226
      %s229 = sphi 0, %s228
      %s243 = sphi 0, %s229
      %s247 = sphi 0, %s247
      %s249 = sphi 0, %s247
      %s250 = sphi 0, %s249
      %s264 = sphi 0, %s250
      %s268 = sphi 0, %s268
      %s270 = sphi 0, %s268
      %s271 = sphi 0, %s270
      %s285 = sphi 0, %s271
      %s291 = sphi 0, %s293
      %s294 = sphi 0, %s291
      %s295 = sphi 0, %s294
      %s311 = sphi 0, %s295
    $region4: #{tpu_custom_call.1} parent=1 // loop_header_branch
      %27 = sbr.rel (%p25) target = $region8
    $region5: #{tpu_custom_call.1} parent=1 // loop_body
      %s29 = ssub.s32 %s24, 1
      %s30 = ssub.s32 %s24, 2
      %s31 = sadd.s32 %s24, 1
      %s32 = ssub.s32 %s24, %s31
      %p33 = scmp.eq.s32.totalorder %s32, 0
      %s35 = sadd.s32 %s34, 1
      %s36 = scalar_select %p33, %s34, %s35
      %p39 = pneg %p33
      %p40 = scmp.eq.s32.totalorder %s24, 1
      %p41 = por %p39, %p40
      %p42 = scmp.ne.s32.totalorder %s34, %s37
      %p43 = scmp.eq.s32.totalorder %s24, 0
      %p44 = por %p42, %p43
      %p45 = scmp.ne.s32.totalorder %s34, %s37
      %p46 = scmp.eq.s32.totalorder %s29, 1
      %p47 = por %p45, %p46
      %p48 = scmp.ne.s32.totalorder %s37, %s38
      %p49 = scmp.eq.s32.totalorder %s29, 0
      %p50 = por %p48, %p49
      %p51 = scmp.ne.s32.totalorder %s37, %s38
      %p52 = scmp.eq.s32.totalorder %s30, 1
      %p53 = por %p51, %p52
      %p55 = scmp.ne.s32.totalorder %s38, %s54
      %p56 = scmp.eq.s32.totalorder %s30, 0
      %p57 = por %p55, %p56
      %s59 = sadd.s32 %s58, 1
      %p62 = scmp.eq.s32.totalorder %s24, 1
      %p63 = scmp.ne.s32.totalorder %s58, %s60
      %p64 = scmp.eq.s32.totalorder %s24, 0
      %p65 = por %p63, %p64
      %p66 = scmp.ne.s32.totalorder %s58, %s60
      %p67 = scmp.eq.s32.totalorder %s29, 1
      %p68 = por %p66, %p67
      %p69 = scmp.ne.s32.totalorder %s60, %s61
      %p70 = scmp.eq.s32.totalorder %s29, 0
      %p71 = por %p69, %p70
      %p72 = scmp.ne.s32.totalorder %s60, %s61
      %p73 = scmp.eq.s32.totalorder %s30, 1
      %p74 = por %p72, %p73
      %p76 = scmp.ne.s32.totalorder %s61, %s75
      %p77 = scmp.eq.s32.totalorder %s30, 0
      %p78 = por %p76, %p77
      %s80 = sadd.s32 %s79, 1
      %p83 = scmp.eq.s32.totalorder %s24, 1
      %p84 = scmp.ne.s32.totalorder %s79, %s81
      %p85 = scmp.eq.s32.totalorder %s24, 0
      %p86 = por %p84, %p85
      %p87 = scmp.ne.s32.totalorder %s79, %s81
      %p88 = scmp.eq.s32.totalorder %s29, 1
      %p89 = por %p87, %p88
      %p90 = scmp.ne.s32.totalorder %s81, %s82
      %p91 = scmp.eq.s32.totalorder %s29, 0
      %p92 = por %p90, %p91
      %p93 = scmp.ne.s32.totalorder %s81, %s82
      %p94 = scmp.eq.s32.totalorder %s30, 1
      %p95 = por %p93, %p94
      %p97 = scmp.ne.s32.totalorder %s82, %s96
      %p98 = scmp.eq.s32.totalorder %s30, 0
      %p99 = por %p97, %p98
      %s101 = sadd.s32 %s100, 1
      %p104 = scmp.eq.s32.totalorder %s24, 1
      %p105 = scmp.ne.s32.totalorder %s100, %s102
      %p106 = scmp.eq.s32.totalorder %s24, 0
      %p107 = por %p105, %p106
      %p108 = scmp.ne.s32.totalorder %s100, %s102
      %p109 = scmp.eq.s32.totalorder %s29, 1
      %p110 = por %p108, %p109
      %p111 = scmp.ne.s32.totalorder %s102, %s103
      %p112 = scmp.eq.s32.totalorder %s29, 0
      %p113 = por %p111, %p112
      %p114 = scmp.ne.s32.totalorder %s102, %s103
      %p115 = scmp.eq.s32.totalorder %s30, 1
      %p116 = por %p114, %p115
      %p118 = scmp.ne.s32.totalorder %s103, %s117
      %p119 = scmp.eq.s32.totalorder %s30, 0
      %p120 = por %p118, %p119
      %s122 = sadd.s32 %s121, 1
      %p125 = scmp.eq.s32.totalorder %s24, 1
      %p126 = scmp.ne.s32.totalorder %s121, %s123
      %p127 = scmp.eq.s32.totalorder %s24, 0
      %p128 = por %p126, %p127
      %p129 = scmp.ne.s32.totalorder %s121, %s123
      %p130 = scmp.eq.s32.totalorder %s29, 1
      %p131 = por %p129, %p130
      %p132 = scmp.ne.s32.totalorder %s123, %s124
      %p133 = scmp.eq.s32.totalorder %s29, 0
      %p134 = por %p132, %p133
      %p135 = scmp.ne.s32.totalorder %s123, %s124
      %p136 = scmp.eq.s32.totalorder %s30, 1
      %p137 = por %p135, %p136
      %p139 = scmp.ne.s32.totalorder %s124, %s138
      %p140 = scmp.eq.s32.totalorder %s30, 0
      %p141 = por %p139, %p140
      %s143 = sadd.s32 %s142, 1
      %p146 = scmp.eq.s32.totalorder %s24, 1
      %p147 = scmp.ne.s32.totalorder %s142, %s144
      %p148 = scmp.eq.s32.totalorder %s24, 0
      %p149 = por %p147, %p148
      %p150 = scmp.ne.s32.totalorder %s142, %s144
      %p151 = scmp.eq.s32.totalorder %s29, 1
      %p152 = por %p150, %p151
      %p153 = scmp.ne.s32.totalorder %s144, %s145
      %p154 = scmp.eq.s32.totalorder %s29, 0
      %p155 = por %p153, %p154
      %p156 = scmp.ne.s32.totalorder %s144, %s145
      %p157 = scmp.eq.s32.totalorder %s30, 1
      %p158 = por %p156, %p157
      %p160 = scmp.ne.s32.totalorder %s145, %s159
      %p161 = scmp.eq.s32.totalorder %s30, 0
      %p162 = por %p160, %p161
      %s164 = sadd.s32 %s163, 1
      %p167 = scmp.eq.s32.totalorder %s24, 1
      %p168 = scmp.ne.s32.totalorder %s163, %s165
      %p169 = scmp.eq.s32.totalorder %s24, 0
      %p170 = por %p168, %p169
      %p171 = scmp.ne.s32.totalorder %s163, %s165
      %p172 = scmp.eq.s32.totalorder %s29, 1
      %p173 = por %p171, %p172
      %p174 = scmp.ne.s32.totalorder %s165, %s166
      %p175 = scmp.eq.s32.totalorder %s29, 0
      %p176 = por %p174, %p175
      %p177 = scmp.ne.s32.totalorder %s165, %s166
      %p178 = scmp.eq.s32.totalorder %s30, 1
      %p179 = por %p177, %p178
      %p181 = scmp.ne.s32.totalorder %s166, %s180
      %p182 = scmp.eq.s32.totalorder %s30, 0
      %p183 = por %p181, %p182
      %s185 = sadd.s32 %s184, 1
      %p188 = scmp.eq.s32.totalorder %s24, 1
      %p189 = scmp.ne.s32.totalorder %s184, %s186
      %p190 = scmp.eq.s32.totalorder %s24, 0
      %p191 = por %p189, %p190
      %p192 = scmp.ne.s32.totalorder %s184, %s186
      %p193 = scmp.eq.s32.totalorder %s29, 1
      %p194 = por %p192, %p193
      %p195 = scmp.ne.s32.totalorder %s186, %s187
      %p196 = scmp.eq.s32.totalorder %s29, 0
      %p197 = por %p195, %p196
      %p198 = scmp.ne.s32.totalorder %s186, %s187
      %p199 = scmp.eq.s32.totalorder %s30, 1
      %p200 = por %p198, %p199
      %p202 = scmp.ne.s32.totalorder %s187, %s201
      %p203 = scmp.eq.s32.totalorder %s30, 0
      %p204 = por %p202, %p203
      %s206 = sadd.s32 %s205, 1
      %p209 = scmp.eq.s32.totalorder %s24, 1
      %p210 = scmp.ne.s32.totalorder %s205, %s207
      %p211 = scmp.eq.s32.totalorder %s24, 0
      %p212 = por %p210, %p211
      %p213 = scmp.ne.s32.totalorder %s205, %s207
      %p214 = scmp.eq.s32.totalorder %s29, 1
      %p215 = por %p213, %p214
      %p216 = scmp.ne.s32.totalorder %s207, %s208
      %p217 = scmp.eq.s32.totalorder %s29, 0
      %p218 = por %p216, %p217
      %p219 = scmp.ne.s32.totalorder %s207, %s208
      %p220 = scmp.eq.s32.totalorder %s30, 1
      %p221 = por %p219, %p220
      %p223 = scmp.ne.s32.totalorder %s208, %s222
      %p224 = scmp.eq.s32.totalorder %s30, 0
      %p225 = por %p223, %p224
      %s227 = sadd.s32 %s226, 1
      %p230 = scmp.eq.s32.totalorder %s24, 1
      %p231 = scmp.ne.s32.totalorder %s226, %s228
      %p232 = scmp.eq.s32.totalorder %s24, 0
      %p233 = por %p231, %p232
      %p234 = scmp.ne.s32.totalorder %s226, %s228
      %p235 = scmp.eq.s32.totalorder %s29, 1
      %p236 = por %p234, %p235
      %p237 = scmp.ne.s32.totalorder %s228, %s229
      %p238 = scmp.eq.s32.totalorder %s29, 0
      %p239 = por %p237, %p238
      %p240 = scmp.ne.s32.totalorder %s228, %s229
      %p241 = scmp.eq.s32.totalorder %s30, 1
      %p242 = por %p240, %p241
      %p244 = scmp.ne.s32.totalorder %s229, %s243
      %p245 = scmp.eq.s32.totalorder %s30, 0
      %p246 = por %p244, %p245
      %s248 = sadd.s32 %s247, 1
      %p251 = scmp.eq.s32.totalorder %s24, 1
      %p252 = scmp.ne.s32.totalorder %s247, %s249
      %p253 = scmp.eq.s32.totalorder %s24, 0
      %p254 = por %p252, %p253
      %p255 = scmp.ne.s32.totalorder %s247, %s249
      %p256 = scmp.eq.s32.totalorder %s29, 1
      %p257 = por %p255, %p256
      %p258 = scmp.ne.s32.totalorder %s249, %s250
      %p259 = scmp.eq.s32.totalorder %s29, 0
      %p260 = por %p258, %p259
      %p261 = scmp.ne.s32.totalorder %s249, %s250
      %p262 = scmp.eq.s32.totalorder %s30, 1
      %p263 = por %p261, %p262
      %p265 = scmp.ne.s32.totalorder %s250, %s264
      %p266 = scmp.eq.s32.totalorder %s30, 0
      %p267 = por %p265, %p266
      %s269 = sadd.s32 %s268, 1
      %p272 = scmp.eq.s32.totalorder %s24, 1
      %p273 = scmp.ne.s32.totalorder %s268, %s270
      %p274 = scmp.eq.s32.totalorder %s24, 0
      %p275 = por %p273, %p274
      %p276 = scmp.ne.s32.totalorder %s268, %s270
      %p277 = scmp.eq.s32.totalorder %s29, 1
      %p278 = por %p276, %p277
      %p279 = scmp.ne.s32.totalorder %s270, %s271
      %p280 = scmp.eq.s32.totalorder %s29, 0
      %p281 = por %p279, %p280
      %p282 = scmp.ne.s32.totalorder %s270, %s271
      %p283 = scmp.eq.s32.totalorder %s30, 1
      %p284 = por %p282, %p283
      %p286 = scmp.ne.s32.totalorder %s271, %s285
      %p287 = scmp.eq.s32.totalorder %s30, 0
      %p288 = por %p286, %p287
      %s289 = ssub.s32 %s24, %s31
      %p290 = scmp.eq.s32.totalorder %s289, 0
      %s292 = sadd.s32 %s291, 1
      %s293 = scalar_select %p290, %s291, %s292
      %p296 = pneg %p290
      %p297 = scmp.eq.s32.totalorder %s24, 1
      %p298 = por %p296, %p297
      %p299 = scmp.ne.s32.totalorder %s291, %s294
      %p300 = scmp.eq.s32.totalorder %s24, 0
      %p301 = por %p299, %p300
      %p302 = scmp.ne.s32.totalorder %s291, %s294
      %p303 = scmp.eq.s32.totalorder %s29, 1
      %p304 = por %p302, %p303
      %p305 = scmp.ne.s32.totalorder %s294, %s295
      %p306 = scmp.eq.s32.totalorder %s29, 0
      %p307 = por %p305, %p306
      %p308 = scmp.ne.s32.totalorder %s294, %s295
      %p309 = scmp.eq.s32.totalorder %s30, 1
      %p310 = por %p308, %p309
      %p312 = scmp.ne.s32.totalorder %s295, %s311
      %p313 = scmp.eq.s32.totalorder %s30, 0
      %p314 = por %p312, %p313
      %p315 = scmp.le.s32.totalorder 1, %s24
      %p316 = scmp.lt.s32.totalorder %s24, 3
      %p317 = pnand %p315, %p316
      %p318 = pneg %p317
      // Predicated region
      $region9: #{tpu_custom_call.1} parent=5 // pred_check
        _
      $region10: #{tpu_custom_call.1} parent=5 // pred_check_branch
        %320 = sbr.rel (%p317) target = $region12
      $region11: #{tpu_custom_call.1} parent=5 // pred_region
        %s321 = ssub.s32 %s24, 1
        // Predicated region
        $region13: #{tpu_custom_call.1} parent=11 // pred_check
          %p322 = pneg %p71
        $region14: #{tpu_custom_call.1} parent=11 // pred_check_branch
          %324 = sbr.rel (%p322) target = $region16
        $region15: #{tpu_custom_call.1} parent=11 // pred_region
          _
        $region16: #{tpu_custom_call.1} parent=11 // pred_fallthru
          _
        // Predicated region
        $region17: #{tpu_custom_call.1} parent=11 // pred_check
          %p325 = pneg %p92
        $region18: #{tpu_custom_call.1} parent=11 // pred_check_branch
          %327 = sbr.rel (%p325) target = $region20
        $region19: #{tpu_custom_call.1} parent=11 // pred_region
          _
        $region20: #{tpu_custom_call.1} parent=11 // pred_fallthru
          _
        // Predicated region
        $region21: #{tpu_custom_call.1} parent=11 // pred_check
          %p328 = pneg %p113
        $region22: #{tpu_custom_call.1} parent=11 // pred_check_branch
          %330 = sbr.rel (%p328) target = $region24
        $region23: #{tpu_custom_call.1} parent=11 // pred_region
          _
        $region24: #{tpu_custom_call.1} parent=11 // pred_fallthru
          _
        // Predicated region
        $region25: #{tpu_custom_call.1} parent=11 // pred_check
          %p331 = pneg %p134
        $region26: #{tpu_custom_call.1} parent=11 // pred_check_branch
          %333 = sbr.rel (%p331) target = $region28
        $region27: #{tpu_custom_call.1} parent=11 // pred_region
          _
        $region28: #{tpu_custom_call.1} parent=11 // pred_fallthru
          _
        // Predicated region
        $region29: #{tpu_custom_call.1} parent=11 // pred_check
          %p334 = pneg %p155
        $region30: #{tpu_custom_call.1} parent=11 // pred_check_branch
          %336 = sbr.rel (%p334) target = $region32
        $region31: #{tpu_custom_call.1} parent=11 // pred_region
          _
        $region32: #{tpu_custom_call.1} parent=11 // pred_fallthru
          _
        // Predicated region
        $region33: #{tpu_custom_call.1} parent=11 // pred_check
          %p337 = pneg %p176
        $region34: #{tpu_custom_call.1} parent=11 // pred_check_branch
          %339 = sbr.rel (%p337) target = $region36
        $region35: #{tpu_custom_call.1} parent=11 // pred_region
          _
        $region36: #{tpu_custom_call.1} parent=11 // pred_fallthru
          _
        // Predicated region
        $region37: #{tpu_custom_call.1} parent=11 // pred_check
          %p340 = pneg %p197
        $region38: #{tpu_custom_call.1} parent=11 // pred_check_branch
          %342 = sbr.rel (%p340) target = $region40
        $region39: #{tpu_custom_call.1} parent=11 // pred_region
          _
        $region40: #{tpu_custom_call.1} parent=11 // pred_fallthru
          _
        // Predicated region
        $region41: #{tpu_custom_call.1} parent=11 // pred_check
          %p343 = pneg %p218
        $region42: #{tpu_custom_call.1} parent=11 // pred_check_branch
          %345 = sbr.rel (%p343) target = $region44
        $region43: #{tpu_custom_call.1} parent=11 // pred_region
          _
        $region44: #{tpu_custom_call.1} parent=11 // pred_fallthru
          _
        // Predicated region
        $region45: #{tpu_custom_call.1} parent=11 // pred_check
          %p346 = pneg %p239
        $region46: #{tpu_custom_call.1} parent=11 // pred_check_branch
          %348 = sbr.rel (%p346) target = $region48
        $region47: #{tpu_custom_call.1} parent=11 // pred_region
          _
        $region48: #{tpu_custom_call.1} parent=11 // pred_fallthru
          _
        // Predicated region
        $region49: #{tpu_custom_call.1} parent=11 // pred_check
          %p349 = pneg %p260
        $region50: #{tpu_custom_call.1} parent=11 // pred_check_branch
          %351 = sbr.rel (%p349) target = $region52
        $region51: #{tpu_custom_call.1} parent=11 // pred_region
          _
        $region52: #{tpu_custom_call.1} parent=11 // pred_fallthru
          _
        // Predicated region
        $region53: #{tpu_custom_call.1} parent=11 // pred_check
          %p352 = pneg %p281
        $region54: #{tpu_custom_call.1} parent=11 // pred_check_branch
          %354 = sbr.rel (%p352) target = $region56
        $region55: #{tpu_custom_call.1} parent=11 // pred_region
          _
        $region56: #{tpu_custom_call.1} parent=11 // pred_fallthru
          _
      $region12: #{tpu_custom_call.1} parent=5 // pred_fallthru
        _
      %p355 = scmp.lt.s32.totalorder %s24, 2
      // Predicated region
      $region57: #{tpu_custom_call.1} parent=5 // pred_check
        %p356 = pneg %p355
      $region58: #{tpu_custom_call.1} parent=5 // pred_check_branch
        %358 = sbr.rel (%p356) target = $region60
      $region59: #{tpu_custom_call.1} parent=5 // pred_region
        // Predicated region
        $region61: #{tpu_custom_call.1} parent=59 // pred_check
          %p359 = pneg %p44
        $region62: #{tpu_custom_call.1} parent=59 // pred_check_branch
          %361 = sbr.rel (%p359) target = $region64
        $region63: #{tpu_custom_call.1} parent=59 // pred_region
          %s362 = sand.u32 %s34, 1
          %s363 = scalar_lea.sflag [#allocation3], %s362
          %s364 = sand.u32 %s34, 1
          %s365 = smul.addr %s364, 8
          %s366 = scalar_lea.vmem [#allocation2], %s365
          %s368 = ssub.s32 128, 128
          %369 = vsyncadd %s363, %s368
          %s370 = smul.addr %s24, 128
          %s371 = scalar_lea.hbm %s0, %s370
          %s373 = sshll.u32 %s366, 4
          %s374 = int_to_ptr.vmem [resolvable:$true] %s373
          %376 = dma.hbm_to_vmem [thread:$0]  %s371, 128, %s374, %s363
        $region64: #{tpu_custom_call.1} parent=59 // pred_fallthru
          _
      $region60: #{tpu_custom_call.1} parent=5 // pred_fallthru
        _
      %p377 = scmp.le.s32.totalorder 1, %s24
      %p378 = scmp.lt.s32.totalorder %s24, 3
      %p379 = pnand %p377, %p378
      %p380 = pneg %p379
      // Predicated region
      $region65: #{tpu_custom_call.1} parent=5 // pred_check
        _
      $region66: #{tpu_custom_call.1} parent=5 // pred_check_branch
        %382 = sbr.rel (%p379) target = $region68
      $region67: #{tpu_custom_call.1} parent=5 // pred_region
        %s383 = ssub.s32 %s24, 1
        %s384 = sand.u32 %s37, 1
        %s385 = scalar_lea.sflag [#allocation3], %s384
        %s386 = sand.u32 %s37, 1
        %s387 = smul.addr %s386, 8
        %s388 = scalar_lea.vmem [#allocation2], %s387
        // Predicated region
        $region69: #{tpu_custom_call.1} parent=67 // pred_check
          %p389 = pneg %p50
        $region70: #{tpu_custom_call.1} parent=67 // pred_check_branch
          %391 = sbr.rel (%p389) target = $region72
        $region71: #{tpu_custom_call.1} parent=67 // pred_region
          %392 = dma.done %s385, 128
        $region72: #{tpu_custom_call.1} parent=67 // pred_fallthru
          _
        %s393 = sand.u32 %s37, 1
        %s394 = scalar_lea.sflag [#allocation3], %s393
        %s395 = sand.u32 %s37, 1
        %s396 = smul.addr %s395, 8
        %s397 = scalar_lea.vmem [#allocation2], %s396
        %p398 = pneg %p50
        %p399 = pneg %p47
        %p400 = pneg %p71
        %p401 = pneg %p68
        %p402 = pneg %p92
        %p403 = pneg %p89
        %p404 = pneg %p113
        %p405 = pneg %p110
        %p406 = pneg %p134
        %p407 = pneg %p131
        %p408 = pneg %p155
        %p409 = pneg %p152
        %p410 = pneg %p176
        %p411 = pneg %p173
        %p412 = pneg %p197
        %p413 = pneg %p194
        %p414 = pneg %p218
        %p415 = pneg %p215
        %p416 = pneg %p239
        %p417 = pneg %p236
        %p418 = pneg %p260
        %p419 = pneg %p257
        %p420 = pneg %p281
        %p421 = pneg %p278
        %p422 = pneg %p307
        %p423 = pneg %p304
        %s424 = sand.u32 %s294, 1
        %s425 = scalar_lea.sflag [#allocation4], %s424
        %s426 = sand.u32 %s294, 1
        %s427 = smul.addr %s426, 8
        %s428 = scalar_lea.vmem [#allocation5], %s427
        %v429 = vld [vmem:[%s388] sm:$0xff]
        loop: start=0, step=1, limit=2
        $region73: #{tpu_custom_call.1} parent=67 // loop_pre_header
          _
        $region74: #{tpu_custom_call.1} parent=67 // loop_header
          %s431 = sphi 0, %s435
          %p432 = scmp.ge.s32.totalorder %s431, 2
          %v436 = vphi %v429, %v2072
        $region75: #{tpu_custom_call.1} parent=67 // loop_header_branch
          %434 = sbr.rel (%p432) target = $region79
        $region76: #{tpu_custom_call.1} parent=67 // loop_body
          %s437 = scalar_lea.vmem %s5, %s431
          %v438 = vld [vmem:[%s437] sm:$0x1]
          %vm439 = vcmask 261120
          %v440 = vsel %vm439, %v436, 0.0
          %441 = vadd.xlane.f32.xlu0 %v440
          %v442 = vpop.xlane.xlu0 %441
          %v443 = vrcp.pop 32.0
          %v444 = vmul.f32 %v442, %v443
          %v445 = vsub.f32 %v436, %v444
          %v446 = vmul.f32 %v445, %v445
          %v447 = vsel %vm439, %v446, 0.0
          %448 = vadd.xlane.f32.xlu0 %v447
          %v449 = vpop.xlane.xlu0 %448
          %v450 = vmul.f32 %v449, %v443
          %v451 = vadd.f32 %v450, 1e-05
          %v452 = vrsqrt.pop %v451
          %v453 = vmul.f32 %v445, %v452
          %v455 = vlaneseq
          %v456 = vshrl.u32 %v455, 7
          %v457 = vsub.s32 0, %v456
          %v458 = vrot.slane %v438, %v457
          %v460 = vmul.f32 %v453, %v458
          %s461 = smul.u32 %s431, 32
          %s462 = scalar_lea.vmem %s1, %s461
          %v463 = vld [vmem:[%s462] sm:$0xff]
          %v464 = vld [vmem:[%s462 + $0x8] sm:$0xff]
          %v465 = vld [vmem:[%s462 + $0x10] sm:$0xff]
          %v466 = vld [vmem:[%s462 + $0x18] sm:$0xff]
          %s467 = scalar_lea.vmem %s2, %s431
          %v468 = vld [vmem:[%s467] sm:$0x1]
          %v470 = vlaneseq
          %v471 = vshrl.u32 %v470, 7
          %v472 = vsub.s32 0, %v471
          %v473 = vrot.slane %v468, %v472
          %v476 = vsel %vm439, %v460, 0
          %478 = vmatprep.subr.mxu0 0.0
          %479 = vmatpush1.msra.mxu0 %v463
          %480 = vmatprep.subr.mxu0 0.0
          %481 = vmatpush1.msra.mxu0 %v464
          %482 = vmatprep.subr.mxu0 0.0
          %483 = vmatpush1.msra.mxu0 %v465
          %484 = vmatprep.subr.mxu0 0.0
          %485 = vmatpush1.msra.mxu0 %v466
          %486 = vmatprep.subr.mxu0 0.0
          %487 = vmatpush1.msra.mxu0 0.0
          %488 = vmatprep.subr.mxu0 0.0
          %489 = vmatpush1.msra.mxu0 0.0
          %490 = vmatprep.subr.mxu0 0.0
          %491 = vmatpush1.msra.mxu0 0.0
          %492 = vmatprep.subr.mxu0 0.0
          %493 = vmatpush1.msra.mxu0 0.0
          %494 = vmatprep.subr.mxu0 0.0
          %495 = vmatpush1.msra.mxu0 0.0
          %496 = vmatprep.subr.mxu0 0.0
          %497 = vmatpush1.msra.mxu0 0.0
          %498 = vmatprep.subr.mxu0 0.0
          %499 = vmatpush1.msra.mxu0 0.0
          %500 = vmatprep.subr.mxu0 0.0
          %501 = vmatpush1.msra.mxu0 0.0
          %502 = vmatprep.subr.mxu0 0.0
          %503 = vmatpush1.msra.mxu0 0.0
          %504 = vmatprep.subr.mxu0 0.0
          %505 = vmatpush1.msra.mxu0 0.0
          %506 = vmatprep.subr.mxu0 0.0
          %507 = vmatpush1.msra.mxu0 0.0
          %508 = vmatprep.subr.mxu0 0.0
          %509 = vmatpush1.msra.mxu0 0.0
          %510 = vmatprep.subr.mxu0 0.0
          %511 = vmatpush1.msra.mxu0 0.0
          %512 = vmatprep.subr.mxu0 0.0
          %513 = vmatpush1.msra.mxu0 0.0
          %514 = vmatprep.subr.mxu0 0.0
          %515 = vmatpush1.msra.mxu0 0.0
          %516 = vmatprep.subr.mxu0 0.0
          %517 = vmatpush1.msra.mxu0 0.0
          %518 = vmatprep.subr.mxu0 0.0
          %519 = vmatpush1.msra.mxu0 0.0
          %520 = vmatprep.subr.mxu0 0.0
          %521 = vmatpush1.msra.mxu0 0.0
          %522 = vmatprep.subr.mxu0 0.0
          %523 = vmatpush1.msra.mxu0 0.0
          %524 = vmatprep.subr.mxu0 0.0
          %525 = vmatpush1.msra.mxu0 0.0
          %526 = vmatprep.subr.mxu0 0.0
          %527 = vmatpush1.msra.mxu0 0.0
          %528 = vmatprep.subr.mxu0 0.0
          %529 = vmatpush1.msra.mxu0 0.0
          %530 = vmatprep.subr.mxu0 0.0
          %531 = vmatpush1.msra.mxu0 0.0
          %532 = vmatprep.subr.mxu0 0.0
          %533 = vmatpush1.msra.mxu0 0.0
          %534 = vmatprep.subr.mxu0 0.0
          %535 = vmatpush1.msra.mxu0 0.0
          %536 = vmatprep.subr.mxu0 0.0
          %537 = vmatpush1.msra.mxu0 0.0
          %538 = vmatprep.subr.mxu0 0.0
          %539 = vmatpush1.msra.mxu0 0.0
          %540 = vmatprep.subr.mxu0 0.0
          %541 = vmatpush1.msra.mxu0 0.0
          %542 = vmatprep.mubr.f32.mxu0 0.0
          %543 = vmatmul.mubr.f32.gmra.mrb[0].mxu0 %v476
          %v544 = vpop.f32.mrb[0].mxu0
          %v545 = vadd.f32 %v473, %v544
          %v546 = vpop.f32.mrb[0].mxu0
          %547 = vdwg.mxu0
          %549 = vrot.lane.b32.xlu0 %v545, 120
          %v550 = vpop.permute.xlu0 %549
          %552 = vrot.lane.b32.xlu0 %v545, 112
          %v553 = vpop.permute.xlu0 %552
          %555 = vrot.lane.b32.xlu0 %v545, 104
          %v556 = vpop.permute.xlu0 %555
          %v558 = vcombine.low %v545, %v553
          %v559 = vcombine.high %v545, %v553
          %v561 = vunpack.c.l.s4 1983009808
          %v562 = vunpack.c.0.s8 %v561
          %v563 = vlaneseq
          %v564 = vshrl.u32 %v563, 7
          %v565 = vsub.s32 %v562, %v564
          %v566 = vrot.slane %v558, %v565
          %v568 = vunpack.c.l.s4 1983009808
          %v569 = vunpack.c.0.s8 %v568
          %v570 = vlaneseq
          %v571 = vshrl.u32 %v570, 7
          %v572 = vsub.s32 %v569, %v571
          %v573 = vrot.slane %v559, %v572
          %v574 = vcombine.low %v550, %v556
          %v575 = vcombine.high %v550, %v556
          %v577 = vunpack.c.l.s4 1983009808
          %v578 = vunpack.c.0.s8 %v577
          %v579 = vlaneseq
          %v580 = vshrl.u32 %v579, 7
          %v581 = vsub.s32 %v578, %v580
          %v582 = vrot.slane %v574, %v581
          %v584 = vunpack.c.l.s4 1983009808
          %v585 = vunpack.c.0.s8 %v584
          %v586 = vlaneseq
          %v587 = vshrl.u32 %v586, 7
          %v588 = vsub.s32 %v585, %v587
          %v589 = vrot.slane %v575, %v588
          %v590 = vcombine.low %v566, %v582
          %v591 = vcombine.high %v566, %v582
          %v593 = vunpack.c.l.s4 1934713408
          %v594 = vunpack.c.0.s8 %v593
          %v595 = vlaneseq
          %v596 = vshrl.u32 %v595, 7
          %v597 = vsub.s32 %v594, %v596
          %v598 = vrot.slane %v590, %v597
          %v600 = vunpack.c.l.s4 1934713408
          %v601 = vunpack.c.0.s8 %v600
          %v602 = vlaneseq
          %v603 = vshrl.u32 %v602, 7
          %v604 = vsub.s32 %v601, %v603
          %v605 = vrot.slane %v591, %v604
          %v606 = vcombine.low %v573, %v589
          %v607 = vcombine.high %v573, %v589
          %v609 = vunpack.c.l.s4 1934713408
          %v610 = vunpack.c.0.s8 %v609
          %v611 = vlaneseq
          %v612 = vshrl.u32 %v611, 7
          %v613 = vsub.s32 %v610, %v612
          %v614 = vrot.slane %v606, %v613
          %v616 = vunpack.c.l.s4 1934713408
          %v617 = vunpack.c.0.s8 %v616
          %v618 = vlaneseq
          %v619 = vshrl.u32 %v618, 7
          %v620 = vsub.s32 %v617, %v619
          %v621 = vrot.slane %v607, %v620
          %v622 = vcombine.high %v598, 0.0
          %v623 = vcombine.high %v605, 0.0
          %v624 = vcombine.high %v614, 0.0
          %v625 = vcombine.high %v621, 0.0
          %v626 = vcombine.low %v598, %v605
          %v628 = vunpack.c.l.s4 1983009808
          %v629 = vunpack.c.0.s8 %v628
          %v630 = vlaneseq
          %v631 = vshrl.u32 %v630, 7
          %v632 = vsub.s32 %v629, %v631
          %v633 = vrot.slane %v626, %v632
          %v634 = vcombine.low %v622, %v623
          %v636 = vunpack.c.l.s4 1983009808
          %v637 = vunpack.c.0.s8 %v636
          %v638 = vlaneseq
          %v639 = vshrl.u32 %v638, 7
          %v640 = vsub.s32 %v637, %v639
          %v641 = vrot.slane %v634, %v640
          %v642 = vcombine.low %v614, %v621
          %v644 = vunpack.c.l.s4 1983009808
          %v645 = vunpack.c.0.s8 %v644
          %v646 = vlaneseq
          %v647 = vshrl.u32 %v646, 7
          %v648 = vsub.s32 %v645, %v647
          %v649 = vrot.slane %v642, %v648
          %v650 = vcombine.low %v624, %v625
          %v652 = vunpack.c.l.s4 1983009808
          %v653 = vunpack.c.0.s8 %v652
          %v654 = vlaneseq
          %v655 = vshrl.u32 %v654, 7
          %v656 = vsub.s32 %v653, %v655
          %v657 = vrot.slane %v650, %v656
          %v658 = vcombine.low %v633, %v641
          %v659 = vcombine.high %v633, %v641
          %v661 = vunpack.c.l.s4 1934713408
          %v662 = vunpack.c.0.s8 %v661
          %v663 = vlaneseq
          %v664 = vshrl.u32 %v663, 7
          %v665 = vsub.s32 %v662, %v664
          %v666 = vrot.slane %v658, %v665
          %v668 = vunpack.c.l.s4 1934713408
          %v669 = vunpack.c.0.s8 %v668
          %v670 = vlaneseq
          %v671 = vshrl.u32 %v670, 7
          %v672 = vsub.s32 %v669, %v671
          %v673 = vrot.slane %v659, %v672
          %v674 = vcombine.low %v649, %v657
          %v675 = vcombine.high %v649, %v657
          %v677 = vunpack.c.l.s4 1934713408
          %v678 = vunpack.c.0.s8 %v677
          %v679 = vlaneseq
          %v680 = vshrl.u32 %v679, 7
          %v681 = vsub.s32 %v678, %v680
          %v682 = vrot.slane %v674, %v681
          %v684 = vunpack.c.l.s4 1934713408
          %v685 = vunpack.c.0.s8 %v684
          %v686 = vlaneseq
          %v687 = vshrl.u32 %v686, 7
          %v688 = vsub.s32 %v685, %v687
          %v689 = vrot.slane %v675, %v688
          %v690 = vcombine.low %v666, %v682
          %v691 = vcombine.high %v666, %v682
          %v692 = vcombine.low %v673, %v689
          %v693 = vcombine.high %v673, %v689
          %694 = vrot.lane.b32.xlu0 %v545, 96
          %v695 = vpop.permute.xlu0 %694
          %696 = vrot.lane.b32.xlu0 %v550, 96
          %v697 = vpop.permute.xlu0 %696
          %698 = vrot.lane.b32.xlu0 %v553, 96
          %v699 = vpop.permute.xlu0 %698
          %700 = vrot.lane.b32.xlu0 %v556, 96
          %v701 = vpop.permute.xlu0 %700
          %v706 = vcombine.low %v695, %v699
          %v707 = vcombine.high %v695, %v699
          %v709 = vunpack.c.l.s4 1983009808
          %v710 = vunpack.c.0.s8 %v709
          %v711 = vlaneseq
          %v712 = vshrl.u32 %v711, 7
          %v713 = vsub.s32 %v710, %v712
          %v714 = vrot.slane %v706, %v713
          %v716 = vunpack.c.l.s4 1983009808
          %v717 = vunpack.c.0.s8 %v716
          %v718 = vlaneseq
          %v719 = vshrl.u32 %v718, 7
          %v720 = vsub.s32 %v717, %v719
          %v721 = vrot.slane %v707, %v720
          %v722 = vcombine.low %v697, %v701
          %v723 = vcombine.high %v697, %v701
          %v725 = vunpack.c.l.s4 1983009808
          %v726 = vunpack.c.0.s8 %v725
          %v727 = vlaneseq
          %v728 = vshrl.u32 %v727, 7
          %v729 = vsub.s32 %v726, %v728
          %v730 = vrot.slane %v722, %v729
          %v732 = vunpack.c.l.s4 1983009808
          %v733 = vunpack.c.0.s8 %v732
          %v734 = vlaneseq
          %v735 = vshrl.u32 %v734, 7
          %v736 = vsub.s32 %v733, %v735
          %v737 = vrot.slane %v723, %v736
          %v738 = vcombine.low %v714, %v730
          %v739 = vcombine.high %v714, %v730
          %v741 = vunpack.c.l.s4 1934713408
          %v742 = vunpack.c.0.s8 %v741
          %v743 = vlaneseq
          %v744 = vshrl.u32 %v743, 7
          %v745 = vsub.s32 %v742, %v744
          %v746 = vrot.slane %v738, %v745
          %v748 = vunpack.c.l.s4 1934713408
          %v749 = vunpack.c.0.s8 %v748
          %v750 = vlaneseq
          %v751 = vshrl.u32 %v750, 7
          %v752 = vsub.s32 %v749, %v751
          %v753 = vrot.slane %v739, %v752
          %v754 = vcombine.low %v721, %v737
          %v755 = vcombine.high %v721, %v737
          %v757 = vunpack.c.l.s4 1934713408
          %v758 = vunpack.c.0.s8 %v757
          %v759 = vlaneseq
          %v760 = vshrl.u32 %v759, 7
          %v761 = vsub.s32 %v758, %v760
          %v762 = vrot.slane %v754, %v761
          %v764 = vunpack.c.l.s4 1934713408
          %v765 = vunpack.c.0.s8 %v764
          %v766 = vlaneseq
          %v767 = vshrl.u32 %v766, 7
          %v768 = vsub.s32 %v765, %v767
          %v769 = vrot.slane %v755, %v768
          %v770 = vcombine.high %v746, 0.0
          %v771 = vcombine.high %v753, 0.0
          %v772 = vcombine.high %v762, 0.0
          %v773 = vcombine.high %v769, 0.0
          %v774 = vcombine.low %v746, %v753
          %v776 = vunpack.c.l.s4 1983009808
          %v777 = vunpack.c.0.s8 %v776
          %v778 = vlaneseq
          %v779 = vshrl.u32 %v778, 7
          %v780 = vsub.s32 %v777, %v779
          %v781 = vrot.slane %v774, %v780
          %v782 = vcombine.low %v770, %v771
          %v784 = vunpack.c.l.s4 1983009808
          %v785 = vunpack.c.0.s8 %v784
          %v786 = vlaneseq
          %v787 = vshrl.u32 %v786, 7
          %v788 = vsub.s32 %v785, %v787
          %v789 = vrot.slane %v782, %v788
          %v790 = vcombine.low %v762, %v769
          %v792 = vunpack.c.l.s4 1983009808
          %v793 = vunpack.c.0.s8 %v792
          %v794 = vlaneseq
          %v795 = vshrl.u32 %v794, 7
          %v796 = vsub.s32 %v793, %v795
          %v797 = vrot.slane %v790, %v796
          %v798 = vcombine.low %v772, %v773
          %v800 = vunpack.c.l.s4 1983009808
          %v801 = vunpack.c.0.s8 %v800
          %v802 = vlaneseq
          %v803 = vshrl.u32 %v802, 7
          %v804 = vsub.s32 %v801, %v803
          %v805 = vrot.slane %v798, %v804
          %v806 = vcombine.low %v781, %v789
          %v807 = vcombine.high %v781, %v789
          %v809 = vunpack.c.l.s4 1934713408
          %v810 = vunpack.c.0.s8 %v809
          %v811 = vlaneseq
          %v812 = vshrl.u32 %v811, 7
          %v813 = vsub.s32 %v810, %v812
          %v814 = vrot.slane %v806, %v813
          %v816 = vunpack.c.l.s4 1934713408
          %v817 = vunpack.c.0.s8 %v816
          %v818 = vlaneseq
          %v819 = vshrl.u32 %v818, 7
          %v820 = vsub.s32 %v817, %v819
          %v821 = vrot.slane %v807, %v820
          %v822 = vcombine.low %v797, %v805
          %v823 = vcombine.high %v797, %v805
          %v825 = vunpack.c.l.s4 1934713408
          %v826 = vunpack.c.0.s8 %v825
          %v827 = vlaneseq
          %v828 = vshrl.u32 %v827, 7
          %v829 = vsub.s32 %v826, %v828
          %v830 = vrot.slane %v822, %v829
          %v832 = vunpack.c.l.s4 1934713408
          %v833 = vunpack.c.0.s8 %v832
          %v834 = vlaneseq
          %v835 = vshrl.u32 %v834, 7
          %v836 = vsub.s32 %v833, %v835
          %v837 = vrot.slane %v823, %v836
          %v838 = vcombine.low %v814, %v830
          %v839 = vcombine.high %v814, %v830
          %v840 = vcombine.low %v821, %v837
          %v841 = vcombine.high %v821, %v837
          %842 = vrot.lane.b32.xlu0 %v545, 64
          %v843 = vpop.permute.xlu0 %842
          %844 = vrot.lane.b32.xlu0 %v550, 64
          %v845 = vpop.permute.xlu0 %844
          %846 = vrot.lane.b32.xlu0 %v553, 64
          %v847 = vpop.permute.xlu0 %846
          %848 = vrot.lane.b32.xlu0 %v556, 64
          %v849 = vpop.permute.xlu0 %848
          %v854 = vcombine.low %v843, %v847
          %v855 = vcombine.high %v843, %v847
          %v857 = vunpack.c.l.s4 1983009808
          %v858 = vunpack.c.0.s8 %v857
          %v859 = vlaneseq
          %v860 = vshrl.u32 %v859, 7
          %v861 = vsub.s32 %v858, %v860
          %v862 = vrot.slane %v854, %v861
          %v864 = vunpack.c.l.s4 1983009808
          %v865 = vunpack.c.0.s8 %v864
          %v866 = vlaneseq
          %v867 = vshrl.u32 %v866, 7
          %v868 = vsub.s32 %v865, %v867
          %v869 = vrot.slane %v855, %v868
          %v870 = vcombine.low %v845, %v849
          %v871 = vcombine.high %v845, %v849
          %v873 = vunpack.c.l.s4 1983009808
          %v874 = vunpack.c.0.s8 %v873
          %v875 = vlaneseq
          %v876 = vshrl.u32 %v875, 7
          %v877 = vsub.s32 %v874, %v876
          %v878 = vrot.slane %v870, %v877
          %v880 = vunpack.c.l.s4 1983009808
          %v881 = vunpack.c.0.s8 %v880
          %v882 = vlaneseq
          %v883 = vshrl.u32 %v882, 7
          %v884 = vsub.s32 %v881, %v883
          %v885 = vrot.slane %v871, %v884
          %v886 = vcombine.low %v862, %v878
          %v887 = vcombine.high %v862, %v878
          %v889 = vunpack.c.l.s4 1934713408
          %v890 = vunpack.c.0.s8 %v889
          %v891 = vlaneseq
          %v892 = vshrl.u32 %v891, 7
          %v893 = vsub.s32 %v890, %v892
          %v894 = vrot.slane %v886, %v893
          %v896 = vunpack.c.l.s4 1934713408
          %v897 = vunpack.c.0.s8 %v896
          %v898 = vlaneseq
          %v899 = vshrl.u32 %v898, 7
          %v900 = vsub.s32 %v897, %v899
          %v901 = vrot.slane %v887, %v900
          %v902 = vcombine.low %v869, %v885
          %v903 = vcombine.high %v869, %v885
          %v905 = vunpack.c.l.s4 1934713408
          %v906 = vunpack.c.0.s8 %v905
          %v907 = vlaneseq
          %v908 = vshrl.u32 %v907, 7
          %v909 = vsub.s32 %v906, %v908
          %v910 = vrot.slane %v902, %v909
          %v912 = vunpack.c.l.s4 1934713408
          %v913 = vunpack.c.0.s8 %v912
          %v914 = vlaneseq
          %v915 = vshrl.u32 %v914, 7
          %v916 = vsub.s32 %v913, %v915
          %v917 = vrot.slane %v903, %v916
          %v918 = vcombine.high %v894, 0.0
          %v919 = vcombine.high %v901, 0.0
          %v920 = vcombine.high %v910, 0.0
          %v921 = vcombine.high %v917, 0.0
          %v922 = vcombine.low %v894, %v901
          %v924 = vunpack.c.l.s4 1983009808
          %v925 = vunpack.c.0.s8 %v924
          %v926 = vlaneseq
          %v927 = vshrl.u32 %v926, 7
          %v928 = vsub.s32 %v925, %v927
          %v929 = vrot.slane %v922, %v928
          %v930 = vcombine.low %v918, %v919
          %v932 = vunpack.c.l.s4 1983009808
          %v933 = vunpack.c.0.s8 %v932
          %v934 = vlaneseq
          %v935 = vshrl.u32 %v934, 7
          %v936 = vsub.s32 %v933, %v935
          %v937 = vrot.slane %v930, %v936
          %v938 = vcombine.low %v910, %v917
          %v940 = vunpack.c.l.s4 1983009808
          %v941 = vunpack.c.0.s8 %v940
          %v942 = vlaneseq
          %v943 = vshrl.u32 %v942, 7
          %v944 = vsub.s32 %v941, %v943
          %v945 = vrot.slane %v938, %v944
          %v946 = vcombine.low %v920, %v921
          %v948 = vunpack.c.l.s4 1983009808
          %v949 = vunpack.c.0.s8 %v948
          %v950 = vlaneseq
          %v951 = vshrl.u32 %v950, 7
          %v952 = vsub.s32 %v949, %v951
          %v953 = vrot.slane %v946, %v952
          %v954 = vcombine.low %v929, %v937
          %v955 = vcombine.high %v929, %v937
          %v957 = vunpack.c.l.s4 1934713408
          %v958 = vunpack.c.0.s8 %v957
          %v959 = vlaneseq
          %v960 = vshrl.u32 %v959, 7
          %v961 = vsub.s32 %v958, %v960
          %v962 = vrot.slane %v954, %v961
          %v964 = vunpack.c.l.s4 1934713408
          %v965 = vunpack.c.0.s8 %v964
          %v966 = vlaneseq
          %v967 = vshrl.u32 %v966, 7
          %v968 = vsub.s32 %v965, %v967
          %v969 = vrot.slane %v955, %v968
          %v970 = vcombine.low %v945, %v953
          %v971 = vcombine.high %v945, %v953
          %v973 = vunpack.c.l.s4 1934713408
          %v974 = vunpack.c.0.s8 %v973
          %v975 = vlaneseq
          %v976 = vshrl.u32 %v975, 7
          %v977 = vsub.s32 %v974, %v976
          %v978 = vrot.slane %v970, %v977
          %v980 = vunpack.c.l.s4 1934713408
          %v981 = vunpack.c.0.s8 %v980
          %v982 = vlaneseq
          %v983 = vshrl.u32 %v982, 7
          %v984 = vsub.s32 %v981, %v983
          %v985 = vrot.slane %v971, %v984
          %v986 = vcombine.low %v962, %v978
          %v987 = vcombine.high %v962, %v978
          %v988 = vcombine.low %v969, %v985
          %v989 = vcombine.high %v969, %v985
          %vm990 = vcmask 64512
          %v992 = vsel %vm990, %v690, 0
          %v995 = vsel %vm990, %v838, 0
          %997 = vmatprep.subr.mxu0 0.0
          %998 = vmatpush1.xpose.msra.mxu0 %v995
          %999 = vmatprep.subr.mxu0 0.0
          %1000 = vmatpush1.xpose.msra.mxu0 0.0
          %1001 = vmatprep.subr.mxu0 0.0
          %1002 = vmatpush1.xpose.msra.mxu0 0.0
          %1003 = vmatprep.subr.mxu0 0.0
          %1004 = vmatpush1.xpose.msra.mxu0 0.0
          %1005 = vmatprep.subr.mxu0 0.0
          %1006 = vmatpush1.xpose.msra.mxu0 0.0
          %1007 = vmatprep.subr.mxu0 0.0
          %1008 = vmatpush1.xpose.msra.mxu0 0.0
          %1009 = vmatprep.subr.mxu0 0.0
          %1010 = vmatpush1.xpose.msra.mxu0 0.0
          %1011 = vmatprep.subr.mxu0 0.0
          %1012 = vmatpush1.xpose.msra.mxu0 0.0
          %1013 = vmatprep.subr.mxu0 0.0
          %1014 = vmatpush1.xpose.msra.mxu0 0.0
          %1015 = vmatprep.subr.mxu0 0.0
          %1016 = vmatpush1.xpose.msra.mxu0 0.0
          %1017 = vmatprep.subr.mxu0 0.0
          %1018 = vmatpush1.xpose.msra.mxu0 0.0
          %1019 = vmatprep.subr.mxu0 0.0
          %1020 = vmatpush1.xpose.msra.mxu0 0.0
          %1021 = vmatprep.subr.mxu0 0.0
          %1022 = vmatpush1.xpose.msra.mxu0 0.0
          %1023 = vmatprep.subr.mxu0 0.0
          %1024 = vmatpush1.xpose.msra.mxu0 0.0
          %1025 = vmatprep.subr.mxu0 0.0
          %1026 = vmatpush1.xpose.msra.mxu0 0.0
          %1027 = vmatprep.subr.mxu0 0.0
          %1028 = vmatpush1.xpose.msra.mxu0 0.0
          %1029 = vmatprep.subr.mxu0 0.0
          %1030 = vmatpush1.xpose.msra.mxu0 0.0
          %1031 = vmatprep.subr.mxu0 0.0
          %1032 = vmatpush1.xpose.msra.mxu0 0.0
          %1033 = vmatprep.subr.mxu0 0.0
          %1034 = vmatpush1.xpose.msra.mxu0 0.0
          %1035 = vmatprep.subr.mxu0 0.0
          %1036 = vmatpush1.xpose.msra.mxu0 0.0
          %1037 = vmatprep.subr.mxu0 0.0
          %1038 = vmatpush1.xpose.msra.mxu0 0.0
          %1039 = vmatprep.subr.mxu0 0.0
          %1040 = vmatpush1.xpose.msra.mxu0 0.0
          %1041 = vmatprep.subr.mxu0 0.0
          %1042 = vmatpush1.xpose.msra.mxu0 0.0
          %1043 = vmatprep.subr.mxu0 0.0
          %1044 = vmatpush1.xpose.msra.mxu0 0.0
          %1045 = vmatprep.subr.mxu0 0.0
          %1046 = vmatpush1.xpose.msra.mxu0 0.0
          %1047 = vmatprep.subr.mxu0 0.0
          %1048 = vmatpush1.xpose.msra.mxu0 0.0
          %1049 = vmatprep.subr.mxu0 0.0
          %1050 = vmatpush1.xpose.msra.mxu0 0.0
          %1051 = vmatprep.subr.mxu0 0.0
          %1052 = vmatpush1.xpose.msra.mxu0 0.0
          %1053 = vmatprep.subr.mxu0 0.0
          %1054 = vmatpush1.xpose.msra.mxu0 0.0
          %1055 = vmatprep.subr.mxu0 0.0
          %1056 = vmatpush1.xpose.msra.mxu0 0.0
          %1057 = vmatprep.subr.mxu0 0.0
          %1058 = vmatpush1.xpose.msra.mxu0 0.0
          %1059 = vmatprep.subr.mxu0 0.0
          %1060 = vmatpush1.xpose.msra.mxu0 0.0
          %1061 = vmatprep.mubr.f32.mxu0 0.0
          %1062 = vmatmul.mubr.f32.gmra.mrb[0].mxu0 %v992
          %v1063 = vpop.f32.mrb[0].mxu0
          %v1064 = vadd.f32 0.0, %v1063
          %v1065 = vpop.f32.mrb[0].mxu0
          %1066 = vdwg.mxu0
          %v1068 = vsel %vm990, %v691, 0
          %v1071 = vsel %vm990, %v839, 0
          %1073 = vmatprep.subr.mxu0 0.0
          %1074 = vmatpush1.xpose.msra.mxu0 %v1071
          %1075 = vmatprep.subr.mxu0 0.0
          %1076 = vmatpush1.xpose.msra.mxu0 0.0
          %1077 = vmatprep.subr.mxu0 0.0
          %1078 = vmatpush1.xpose.msra.mxu0 0.0
          %1079 = vmatprep.subr.mxu0 0.0
          %1080 = vmatpush1.xpose.msra.mxu0 0.0
          %1081 = vmatprep.subr.mxu0 0.0
          %1082 = vmatpush1.xpose.msra.mxu0 0.0
          %1083 = vmatprep.subr.mxu0 0.0
          %1084 = vmatpush1.xpose.msra.mxu0 0.0
          %1085 = vmatprep.subr.mxu0 0.0
          %1086 = vmatpush1.xpose.msra.mxu0 0.0
          %1087 = vmatprep.subr.mxu0 0.0
          %1088 = vmatpush1.xpose.msra.mxu0 0.0
          %1089 = vmatprep.subr.mxu0 0.0
          %1090 = vmatpush1.xpose.msra.mxu0 0.0
          %1091 = vmatprep.subr.mxu0 0.0
          %1092 = vmatpush1.xpose.msra.mxu0 0.0
          %1093 = vmatprep.subr.mxu0 0.0
          %1094 = vmatpush1.xpose.msra.mxu0 0.0
          %1095 = vmatprep.subr.mxu0 0.0
          %1096 = vmatpush1.xpose.msra.mxu0 0.0
          %1097 = vmatprep.subr.mxu0 0.0
          %1098 = vmatpush1.xpose.msra.mxu0 0.0
          %1099 = vmatprep.subr.mxu0 0.0
          %1100 = vmatpush1.xpose.msra.mxu0 0.0
          %1101 = vmatprep.subr.mxu0 0.0
          %1102 = vmatpush1.xpose.msra.mxu0 0.0
          %1103 = vmatprep.subr.mxu0 0.0
          %1104 = vmatpush1.xpose.msra.mxu0 0.0
          %1105 = vmatprep.subr.mxu0 0.0
          %1106 = vmatpush1.xpose.msra.mxu0 0.0
          %1107 = vmatprep.subr.mxu0 0.0
          %1108 = vmatpush1.xpose.msra.mxu0 0.0
          %1109 = vmatprep.subr.mxu0 0.0
          %1110 = vmatpush1.xpose.msra.mxu0 0.0
          %1111 = vmatprep.subr.mxu0 0.0
          %1112 = vmatpush1.xpose.msra.mxu0 0.0
          %1113 = vmatprep.subr.mxu0 0.0
          %1114 = vmatpush1.xpose.msra.mxu0 0.0
          %1115 = vmatprep.subr.mxu0 0.0
          %1116 = vmatpush1.xpose.msra.mxu0 0.0
          %1117 = vmatprep.subr.mxu0 0.0
          %1118 = vmatpush1.xpose.msra.mxu0 0.0
          %1119 = vmatprep.subr.mxu0 0.0
          %1120 = vmatpush1.xpose.msra.mxu0 0.0
          %1121 = vmatprep.subr.mxu0 0.0
          %1122 = vmatpush1.xpose.msra.mxu0 0.0
          %1123 = vmatprep.subr.mxu0 0.0
          %1124 = vmatpush1.xpose.msra.mxu0 0.0
          %1125 = vmatprep.subr.mxu0 0.0
          %1126 = vmatpush1.xpose.msra.mxu0 0.0
          %1127 = vmatprep.subr.mxu0 0.0
          %1128 = vmatpush1.xpose.msra.mxu0 0.0
          %1129 = vmatprep.subr.mxu0 0.0
          %1130 = vmatpush1.xpose.msra.mxu0 0.0
          %1131 = vmatprep.subr.mxu0 0.0
          %1132 = vmatpush1.xpose.msra.mxu0 0.0
          %1133 = vmatprep.subr.mxu0 0.0
          %1134 = vmatpush1.xpose.msra.mxu0 0.0
          %1135 = vmatprep.subr.mxu0 0.0
          %1136 = vmatpush1.xpose.msra.mxu0 0.0
          %1137 = vmatprep.mubr.f32.mxu0 0.0
          %1138 = vmatmul.mubr.f32.gmra.mrb[0].mxu0 %v1068
          %v1139 = vpop.f32.mrb[0].mxu0
          %v1140 = vadd.f32 0.0, %v1139
          %v1141 = vpop.f32.mrb[0].mxu0
          %1142 = vdwg.mxu0
          %v1144 = vsel %vm990, %v692, 0
          %v1147 = vsel %vm990, %v840, 0
          %1149 = vmatprep.subr.mxu0 0.0
          %1150 = vmatpush1.xpose.msra.mxu0 %v1147
          %1151 = vmatprep.subr.mxu0 0.0
          %1152 = vmatpush1.xpose.msra.mxu0 0.0
          %1153 = vmatprep.subr.mxu0 0.0
          %1154 = vmatpush1.xpose.msra.mxu0 0.0
          %1155 = vmatprep.subr.mxu0 0.0
          %1156 = vmatpush1.xpose.msra.mxu0 0.0
          %1157 = vmatprep.subr.mxu0 0.0
          %1158 = vmatpush1.xpose.msra.mxu0 0.0
          %1159 = vmatprep.subr.mxu0 0.0
          %1160 = vmatpush1.xpose.msra.mxu0 0.0
          %1161 = vmatprep.subr.mxu0 0.0
          %1162 = vmatpush1.xpose.msra.mxu0 0.0
          %1163 = vmatprep.subr.mxu0 0.0
          %1164 = vmatpush1.xpose.msra.mxu0 0.0
          %1165 = vmatprep.subr.mxu0 0.0
          %1166 = vmatpush1.xpose.msra.mxu0 0.0
          %1167 = vmatprep.subr.mxu0 0.0
          %1168 = vmatpush1.xpose.msra.mxu0 0.0
          %1169 = vmatprep.subr.mxu0 0.0
          %1170 = vmatpush1.xpose.msra.mxu0 0.0
          %1171 = vmatprep.subr.mxu0 0.0
          %1172 = vmatpush1.xpose.msra.mxu0 0.0
          %1173 = vmatprep.subr.mxu0 0.0
          %1174 = vmatpush1.xpose.msra.mxu0 0.0
          %1175 = vmatprep.subr.mxu0 0.0
          %1176 = vmatpush1.xpose.msra.mxu0 0.0
          %1177 = vmatprep.subr.mxu0 0.0
          %1178 = vmatpush1.xpose.msra.mxu0 0.0
          %1179 = vmatprep.subr.mxu0 0.0
          %1180 = vmatpush1.xpose.msra.mxu0 0.0
          %1181 = vmatprep.subr.mxu0 0.0
          %1182 = vmatpush1.xpose.msra.mxu0 0.0
          %1183 = vmatprep.subr.mxu0 0.0
          %1184 = vmatpush1.xpose.msra.mxu0 0.0
          %1185 = vmatprep.subr.mxu0 0.0
          %1186 = vmatpush1.xpose.msra.mxu0 0.0
          %1187 = vmatprep.subr.mxu0 0.0
          %1188 = vmatpush1.xpose.msra.mxu0 0.0
          %1189 = vmatprep.subr.mxu0 0.0
          %1190 = vmatpush1.xpose.msra.mxu0 0.0
          %1191 = vmatprep.subr.mxu0 0.0
          %1192 = vmatpush1.xpose.msra.mxu0 0.0
          %1193 = vmatprep.subr.mxu0 0.0
          %1194 = vmatpush1.xpose.msra.mxu0 0.0
          %1195 = vmatprep.subr.mxu0 0.0
          %1196 = vmatpush1.xpose.msra.mxu0 0.0
          %1197 = vmatprep.subr.mxu0 0.0
          %1198 = vmatpush1.xpose.msra.mxu0 0.0
          %1199 = vmatprep.subr.mxu0 0.0
          %1200 = vmatpush1.xpose.msra.mxu0 0.0
          %1201 = vmatprep.subr.mxu0 0.0
          %1202 = vmatpush1.xpose.msra.mxu0 0.0
          %1203 = vmatprep.subr.mxu0 0.0
          %1204 = vmatpush1.xpose.msra.mxu0 0.0
          %1205 = vmatprep.subr.mxu0 0.0
          %1206 = vmatpush1.xpose.msra.mxu0 0.0
          %1207 = vmatprep.subr.mxu0 0.0
          %1208 = vmatpush1.xpose.msra.mxu0 0.0
          %1209 = vmatprep.subr.mxu0 0.0
          %1210 = vmatpush1.xpose.msra.mxu0 0.0
          %1211 = vmatprep.subr.mxu0 0.0
          %1212 = vmatpush1.xpose.msra.mxu0 0.0
          %1213 = vmatprep.mubr.f32.mxu0 0.0
          %1214 = vmatmul.mubr.f32.gmra.mrb[0].mxu0 %v1144
          %v1215 = vpop.f32.mrb[0].mxu0
          %v1216 = vadd.f32 0.0, %v1215
          %v1217 = vpop.f32.mrb[0].mxu0
          %1218 = vdwg.mxu0
          %v1220 = vsel %vm990, %v693, 0
          %v1223 = vsel %vm990, %v841, 0
          %1225 = vmatprep.subr.mxu0 0.0
          %1226 = vmatpush1.xpose.msra.mxu0 %v1223
          %1227 = vmatprep.subr.mxu0 0.0
          %1228 = vmatpush1.xpose.msra.mxu0 0.0
          %1229 = vmatprep.subr.mxu0 0.0
          %1230 = vmatpush1.xpose.msra.mxu0 0.0
          %1231 = vmatprep.subr.mxu0 0.0
          %1232 = vmatpush1.xpose.msra.mxu0 0.0
          %1233 = vmatprep.subr.mxu0 0.0
          %1234 = vmatpush1.xpose.msra.mxu0 0.0
          %1235 = vmatprep.subr.mxu0 0.0
          %1236 = vmatpush1.xpose.msra.mxu0 0.0
          %1237 = vmatprep.subr.mxu0 0.0
          %1238 = vmatpush1.xpose.msra.mxu0 0.0
          %1239 = vmatprep.subr.mxu0 0.0
          %1240 = vmatpush1.xpose.msra.mxu0 0.0
          %1241 = vmatprep.subr.mxu0 0.0
          %1242 = vmatpush1.xpose.msra.mxu0 0.0
          %1243 = vmatprep.subr.mxu0 0.0
          %1244 = vmatpush1.xpose.msra.mxu0 0.0
          %1245 = vmatprep.subr.mxu0 0.0
          %1246 = vmatpush1.xpose.msra.mxu0 0.0
          %1247 = vmatprep.subr.mxu0 0.0
          %1248 = vmatpush1.xpose.msra.mxu0 0.0
          %1249 = vmatprep.subr.mxu0 0.0
          %1250 = vmatpush1.xpose.msra.mxu0 0.0
          %1251 = vmatprep.subr.mxu0 0.0
          %1252 = vmatpush1.xpose.msra.mxu0 0.0
          %1253 = vmatprep.subr.mxu0 0.0
          %1254 = vmatpush1.xpose.msra.mxu0 0.0
          %1255 = vmatprep.subr.mxu0 0.0
          %1256 = vmatpush1.xpose.msra.mxu0 0.0
          %1257 = vmatprep.subr.mxu0 0.0
          %1258 = vmatpush1.xpose.msra.mxu0 0.0
          %1259 = vmatprep.subr.mxu0 0.0
          %1260 = vmatpush1.xpose.msra.mxu0 0.0
          %1261 = vmatprep.subr.mxu0 0.0
          %1262 = vmatpush1.xpose.msra.mxu0 0.0
          %1263 = vmatprep.subr.mxu0 0.0
          %1264 = vmatpush1.xpose.msra.mxu0 0.0
          %1265 = vmatprep.subr.mxu0 0.0
          %1266 = vmatpush1.xpose.msra.mxu0 0.0
          %1267 = vmatprep.subr.mxu0 0.0
          %1268 = vmatpush1.xpose.msra.mxu0 0.0
          %1269 = vmatprep.subr.mxu0 0.0
          %1270 = vmatpush1.xpose.msra.mxu0 0.0
          %1271 = vmatprep.subr.mxu0 0.0
          %1272 = vmatpush1.xpose.msra.mxu0 0.0
          %1273 = vmatprep.subr.mxu0 0.0
          %1274 = vmatpush1.xpose.msra.mxu0 0.0
          %1275 = vmatprep.subr.mxu0 0.0
          %1276 = vmatpush1.xpose.msra.mxu0 0.0
          %1277 = vmatprep.subr.mxu0 0.0
          %1278 = vmatpush1.xpose.msra.mxu0 0.0
          %1279 = vmatprep.subr.mxu0 0.0
          %1280 = vmatpush1.xpose.msra.mxu0 0.0
          %1281 = vmatprep.subr.mxu0 0.0
          %1282 = vmatpush1.xpose.msra.mxu0 0.0
          %1283 = vmatprep.subr.mxu0 0.0
          %1284 = vmatpush1.xpose.msra.mxu0 0.0
          %1285 = vmatprep.subr.mxu0 0.0
          %1286 = vmatpush1.xpose.msra.mxu0 0.0
          %1287 = vmatprep.subr.mxu0 0.0
          %1288 = vmatpush1.xpose.msra.mxu0 0.0
          %1289 = vmatprep.mubr.f32.mxu0 0.0
          %1290 = vmatmul.mubr.f32.gmra.mrb[0].mxu0 %v1220
          %v1291 = vpop.f32.mrb[0].mxu0
          %v1292 = vadd.f32 0.0, %v1291
          %v1293 = vpop.f32.mrb[0].mxu0
          %1294 = vdwg.mxu0
          %v1295 = vsel %vm990, %v1064, -inf
          %1296 = vmax.xlane.f32.xlu0 %v1295
          %v1297 = vpop.xlane.xlu0 %1296
          %v1298 = vsel %vm990, %v1140, -inf
          %1299 = vmax.xlane.f32.xlu0 %v1298
          %v1300 = vpop.xlane.xlu0 %1299
          %v1301 = vsel %vm990, %v1216, -inf
          %1302 = vmax.xlane.f32.xlu0 %v1301
          %v1303 = vpop.xlane.xlu0 %1302
          %v1304 = vsel %vm990, %v1292, -inf
          %1305 = vmax.xlane.f32.xlu0 %v1304
          %v1306 = vpop.xlane.xlu0 %1305
          %v1307 = vsub.f32 %v1064, %v1297
          %v1308 = vsub.f32 %v1140, %v1300
          %v1309 = vsub.f32 %v1216, %v1303
          %v1310 = vsub.f32 %v1292, %v1306
          %v1311 = vmul.f32 %v1307, 1.442695
          %v1312 = vpow.pop %v1311
          %v1313 = vmul.f32 %v1308, 1.442695
          %v1314 = vpow.pop %v1313
          %v1315 = vmul.f32 %v1309, 1.442695
          %v1316 = vpow.pop %v1315
          %v1317 = vmul.f32 %v1310, 1.442695
          %v1318 = vpow.pop %v1317
          %v1319 = vsel %vm990, %v1312, 0.0
          %1320 = vadd.xlane.f32.xlu0 %v1319
          %v1321 = vpop.xlane.xlu0 %1320
          %v1322 = vsel %vm990, %v1314, 0.0
          %1323 = vadd.xlane.f32.xlu0 %v1322
          %v1324 = vpop.xlane.xlu0 %1323
          %v1325 = vsel %vm990, %v1316, 0.0
          %1326 = vadd.xlane.f32.xlu0 %v1325
          %v1327 = vpop.xlane.xlu0 %1326
          %v1328 = vsel %vm990, %v1318, 0.0
          %1329 = vadd.xlane.f32.xlu0 %v1328
          %v1330 = vpop.xlane.xlu0 %1329
          %v1331 = vrcp.pop %v1321
          %v1332 = vrcp.pop %v1324
          %v1333 = vrcp.pop %v1327
          %v1334 = vrcp.pop %v1330
          %v1335 = vmul.f32 %v1312, %v1331
          %v1336 = vmul.f32 %v1314, %v1332
          %v1337 = vmul.f32 %v1316, %v1333
          %v1338 = vmul.f32 %v1318, %v1334
          %v1340 = vsel %vm990, %v1335, 0
          %1342 = vmatprep.subr.mxu0 0.0
          %1343 = vmatpush1.msra.mxu0 %v986
          %1344 = vmatprep.subr.mxu0 0.0
          %1345 = vmatpush1.msra.mxu0 0.0
          %1346 = vmatprep.subr.mxu0 0.0
          %1347 = vmatpush1.msra.mxu0 0.0
          %1348 = vmatprep.subr.mxu0 0.0
          %1349 = vmatpush1.msra.mxu0 0.0
          %1350 = vmatprep.subr.mxu0 0.0
          %1351 = vmatpush1.msra.mxu0 0.0
          %1352 = vmatprep.subr.mxu0 0.0
          %1353 = vmatpush1.msra.mxu0 0.0
          %1354 = vmatprep.subr.mxu0 0.0
          %1355 = vmatpush1.msra.mxu0 0.0
          %1356 = vmatprep.subr.mxu0 0.0
          %1357 = vmatpush1.msra.mxu0 0.0
          %1358 = vmatprep.subr.mxu0 0.0
          %1359 = vmatpush1.msra.mxu0 0.0
          %1360 = vmatprep.subr.mxu0 0.0
          %1361 = vmatpush1.msra.mxu0 0.0
          %1362 = vmatprep.subr.mxu0 0.0
          %1363 = vmatpush1.msra.mxu0 0.0
          %1364 = vmatprep.subr.mxu0 0.0
          %1365 = vmatpush1.msra.mxu0 0.0
          %1366 = vmatprep.subr.mxu0 0.0
          %1367 = vmatpush1.msra.mxu0 0.0
          %1368 = vmatprep.subr.mxu0 0.0
          %1369 = vmatpush1.msra.mxu0 0.0
          %1370 = vmatprep.subr.mxu0 0.0
          %1371 = vmatpush1.msra.mxu0 0.0
          %1372 = vmatprep.subr.mxu0 0.0
          %1373 = vmatpush1.msra.mxu0 0.0
          %1374 = vmatprep.subr.mxu0 0.0
          %1375 = vmatpush1.msra.mxu0 0.0
          %1376 = vmatprep.subr.mxu0 0.0
          %1377 = vmatpush1.msra.mxu0 0.0
          %1378 = vmatprep.subr.mxu0 0.0
          %1379 = vmatpush1.msra.mxu0 0.0
          %1380 = vmatprep.subr.mxu0 0.0
          %1381 = vmatpush1.msra.mxu0 0.0
          %1382 = vmatprep.subr.mxu0 0.0
          %1383 = vmatpush1.msra.mxu0 0.0
          %1384 = vmatprep.subr.mxu0 0.0
          %1385 = vmatpush1.msra.mxu0 0.0
          %1386 = vmatprep.subr.mxu0 0.0
          %1387 = vmatpush1.msra.mxu0 0.0
          %1388 = vmatprep.subr.mxu0 0.0
          %1389 = vmatpush1.msra.mxu0 0.0
          %1390 = vmatprep.subr.mxu0 0.0
          %1391 = vmatpush1.msra.mxu0 0.0
          %1392 = vmatprep.subr.mxu0 0.0
          %1393 = vmatpush1.msra.mxu0 0.0
          %1394 = vmatprep.subr.mxu0 0.0
          %1395 = vmatpush1.msra.mxu0 0.0
          %1396 = vmatprep.subr.mxu0 0.0
          %1397 = vmatpush1.msra.mxu0 0.0
          %1398 = vmatprep.subr.mxu0 0.0
          %1399 = vmatpush1.msra.mxu0 0.0
          %1400 = vmatprep.subr.mxu0 0.0
          %1401 = vmatpush1.msra.mxu0 0.0
          %1402 = vmatprep.subr.mxu0 0.0
          %1403 = vmatpush1.msra.mxu0 0.0
          %1404 = vmatprep.subr.mxu0 0.0
          %1405 = vmatpush1.msra.mxu0 0.0
          %1406 = vmatprep.mubr.f32.mxu0 0.0
          %1407 = vmatmul.mubr.f32.gmra.mrb[0].mxu0 %v1340
          %v1408 = vpop.f32.mrb[0].mxu0
          %v1409 = vadd.f32 0.0, %v1408
          %v1410 = vpop.f32.mrb[0].mxu0
          %1411 = vdwg.mxu0
          %v1413 = vsel %vm990, %v1336, 0
          %1415 = vmatprep.subr.mxu0 0.0
          %1416 = vmatpush1.msra.mxu0 %v987
          %1417 = vmatprep.subr.mxu0 0.0
          %1418 = vmatpush1.msra.mxu0 0.0
          %1419 = vmatprep.subr.mxu0 0.0
          %1420 = vmatpush1.msra.mxu0 0.0
          %1421 = vmatprep.subr.mxu0 0.0
          %1422 = vmatpush1.msra.mxu0 0.0
          %1423 = vmatprep.subr.mxu0 0.0
          %1424 = vmatpush1.msra.mxu0 0.0
          %1425 = vmatprep.subr.mxu0 0.0
          %1426 = vmatpush1.msra.mxu0 0.0
          %1427 = vmatprep.subr.mxu0 0.0
          %1428 = vmatpush1.msra.mxu0 0.0
          %1429 = vmatprep.subr.mxu0 0.0
          %1430 = vmatpush1.msra.mxu0 0.0
          %1431 = vmatprep.subr.mxu0 0.0
          %1432 = vmatpush1.msra.mxu0 0.0
          %1433 = vmatprep.subr.mxu0 0.0
          %1434 = vmatpush1.msra.mxu0 0.0
          %1435 = vmatprep.subr.mxu0 0.0
          %1436 = vmatpush1.msra.mxu0 0.0
          %1437 = vmatprep.subr.mxu0 0.0
          %1438 = vmatpush1.msra.mxu0 0.0
          %1439 = vmatprep.subr.mxu0 0.0
          %1440 = vmatpush1.msra.mxu0 0.0
          %1441 = vmatprep.subr.mxu0 0.0
          %1442 = vmatpush1.msra.mxu0 0.0
          %1443 = vmatprep.subr.mxu0 0.0
          %1444 = vmatpush1.msra.mxu0 0.0
          %1445 = vmatprep.subr.mxu0 0.0
          %1446 = vmatpush1.msra.mxu0 0.0
          %1447 = vmatprep.subr.mxu0 0.0
          %1448 = vmatpush1.msra.mxu0 0.0
          %1449 = vmatprep.subr.mxu0 0.0
          %1450 = vmatpush1.msra.mxu0 0.0
          %1451 = vmatprep.subr.mxu0 0.0
          %1452 = vmatpush1.msra.mxu0 0.0
          %1453 = vmatprep.subr.mxu0 0.0
          %1454 = vmatpush1.msra.mxu0 0.0
          %1455 = vmatprep.subr.mxu0 0.0
          %1456 = vmatpush1.msra.mxu0 0.0
          %1457 = vmatprep.subr.mxu0 0.0
          %1458 = vmatpush1.msra.mxu0 0.0
          %1459 = vmatprep.subr.mxu0 0.0
          %1460 = vmatpush1.msra.mxu0 0.0
          %1461 = vmatprep.subr.mxu0 0.0
          %1462 = vmatpush1.msra.mxu0 0.0
          %1463 = vmatprep.subr.mxu0 0.0
          %1464 = vmatpush1.msra.mxu0 0.0
          %1465 = vmatprep.subr.mxu0 0.0
          %1466 = vmatpush1.msra.mxu0 0.0
          %1467 = vmatprep.subr.mxu0 0.0
          %1468 = vmatpush1.msra.mxu0 0.0
          %1469 = vmatprep.subr.mxu0 0.0
          %1470 = vmatpush1.msra.mxu0 0.0
          %1471 = vmatprep.subr.mxu0 0.0
          %1472 = vmatpush1.msra.mxu0 0.0
          %1473 = vmatprep.subr.mxu0 0.0
          %1474 = vmatpush1.msra.mxu0 0.0
          %1475 = vmatprep.subr.mxu0 0.0
          %1476 = vmatpush1.msra.mxu0 0.0
          %1477 = vmatprep.subr.mxu0 0.0
          %1478 = vmatpush1.msra.mxu0 0.0
          %1479 = vmatprep.mubr.f32.mxu0 0.0
          %1480 = vmatmul.mubr.f32.gmra.mrb[0].mxu0 %v1413
          %v1481 = vpop.f32.mrb[0].mxu0
          %v1482 = vadd.f32 0.0, %v1481
          %v1483 = vpop.f32.mrb[0].mxu0
          %1484 = vdwg.mxu0
          %v1486 = vsel %vm990, %v1337, 0
          %1488 = vmatprep.subr.mxu0 0.0
          %1489 = vmatpush1.msra.mxu0 %v988
          %1490 = vmatprep.subr.mxu0 0.0
          %1491 = vmatpush1.msra.mxu0 0.0
          %1492 = vmatprep.subr.mxu0 0.0
          %1493 = vmatpush1.msra.mxu0 0.0
          %1494 = vmatprep.subr.mxu0 0.0
          %1495 = vmatpush1.msra.mxu0 0.0
          %1496 = vmatprep.subr.mxu0 0.0
          %1497 = vmatpush1.msra.mxu0 0.0
          %1498 = vmatprep.subr.mxu0 0.0
          %1499 = vmatpush1.msra.mxu0 0.0
          %1500 = vmatprep.subr.mxu0 0.0
          %1501 = vmatpush1.msra.mxu0 0.0
          %1502 = vmatprep.subr.mxu0 0.0
          %1503 = vmatpush1.msra.mxu0 0.0
          %1504 = vmatprep.subr.mxu0 0.0
          %1505 = vmatpush1.msra.mxu0 0.0
          %1506 = vmatprep.subr.mxu0 0.0
          %1507 = vmatpush1.msra.mxu0 0.0
          %1508 = vmatprep.subr.mxu0 0.0
          %1509 = vmatpush1.msra.mxu0 0.0
          %1510 = vmatprep.subr.mxu0 0.0
          %1511 = vmatpush1.msra.mxu0 0.0
          %1512 = vmatprep.subr.mxu0 0.0
          %1513 = vmatpush1.msra.mxu0 0.0
          %1514 = vmatprep.subr.mxu0 0.0
          %1515 = vmatpush1.msra.mxu0 0.0
          %1516 = vmatprep.subr.mxu0 0.0
          %1517 = vmatpush1.msra.mxu0 0.0
          %1518 = vmatprep.subr.mxu0 0.0
          %1519 = vmatpush1.msra.mxu0 0.0
          %1520 = vmatprep.subr.mxu0 0.0
          %1521 = vmatpush1.msra.mxu0 0.0
          %1522 = vmatprep.subr.mxu0 0.0
          %1523 = vmatpush1.msra.mxu0 0.0
          %1524 = vmatprep.subr.mxu0 0.0
          %1525 = vmatpush1.msra.mxu0 0.0
          %1526 = vmatprep.subr.mxu0 0.0
          %1527 = vmatpush1.msra.mxu0 0.0
          %1528 = vmatprep.subr.mxu0 0.0
          %1529 = vmatpush1.msra.mxu0 0.0
          %1530 = vmatprep.subr.mxu0 0.0
          %1531 = vmatpush1.msra.mxu0 0.0
          %1532 = vmatprep.subr.mxu0 0.0
          %1533 = vmatpush1.msra.mxu0 0.0
          %1534 = vmatprep.subr.mxu0 0.0
          %1535 = vmatpush1.msra.mxu0 0.0
          %1536 = vmatprep.subr.mxu0 0.0
          %1537 = vmatpush1.msra.mxu0 0.0
          %1538 = vmatprep.subr.mxu0 0.0
          %1539 = vmatpush1.msra.mxu0 0.0
          %1540 = vmatprep.subr.mxu0 0.0
          %1541 = vmatpush1.msra.mxu0 0.0
          %1542 = vmatprep.subr.mxu0 0.0
          %1543 = vmatpush1.msra.mxu0 0.0
          %1544 = vmatprep.subr.mxu0 0.0
          %1545 = vmatpush1.msra.mxu0 0.0
          %1546 = vmatprep.subr.mxu0 0.0
          %1547 = vmatpush1.msra.mxu0 0.0
          %1548 = vmatprep.subr.mxu0 0.0
          %1549 = vmatpush1.msra.mxu0 0.0
          %1550 = vmatprep.subr.mxu0 0.0
          %1551 = vmatpush1.msra.mxu0 0.0
          %1552 = vmatprep.mubr.f32.mxu0 0.0
          %1553 = vmatmul.mubr.f32.gmra.mrb[0].mxu0 %v1486
          %v1554 = vpop.f32.mrb[0].mxu0
          %v1555 = vadd.f32 0.0, %v1554
          %v1556 = vpop.f32.mrb[0].mxu0
          %1557 = vdwg.mxu0
          %v1559 = vsel %vm990, %v1338, 0
          %1561 = vmatprep.subr.mxu0 0.0
          %1562 = vmatpush1.msra.mxu0 %v989
          %1563 = vmatprep.subr.mxu0 0.0
          %1564 = vmatpush1.msra.mxu0 0.0
          %1565 = vmatprep.subr.mxu0 0.0
          %1566 = vmatpush1.msra.mxu0 0.0
          %1567 = vmatprep.subr.mxu0 0.0
          %1568 = vmatpush1.msra.mxu0 0.0
          %1569 = vmatprep.subr.mxu0 0.0
          %1570 = vmatpush1.msra.mxu0 0.0
          %1571 = vmatprep.subr.mxu0 0.0
          %1572 = vmatpush1.msra.mxu0 0.0
          %1573 = vmatprep.subr.mxu0 0.0
          %1574 = vmatpush1.msra.mxu0 0.0
          %1575 = vmatprep.subr.mxu0 0.0
          %1576 = vmatpush1.msra.mxu0 0.0
          %1577 = vmatprep.subr.mxu0 0.0
          %1578 = vmatpush1.msra.mxu0 0.0
          %1579 = vmatprep.subr.mxu0 0.0
          %1580 = vmatpush1.msra.mxu0 0.0
          %1581 = vmatprep.subr.mxu0 0.0
          %1582 = vmatpush1.msra.mxu0 0.0
          %1583 = vmatprep.subr.mxu0 0.0
          %1584 = vmatpush1.msra.mxu0 0.0
          %1585 = vmatprep.subr.mxu0 0.0
          %1586 = vmatpush1.msra.mxu0 0.0
          %1587 = vmatprep.subr.mxu0 0.0
          %1588 = vmatpush1.msra.mxu0 0.0
          %1589 = vmatprep.subr.mxu0 0.0
          %1590 = vmatpush1.msra.mxu0 0.0
          %1591 = vmatprep.subr.mxu0 0.0
          %1592 = vmatpush1.msra.mxu0 0.0
          %1593 = vmatprep.subr.mxu0 0.0
          %1594 = vmatpush1.msra.mxu0 0.0
          %1595 = vmatprep.subr.mxu0 0.0
          %1596 = vmatpush1.msra.mxu0 0.0
          %1597 = vmatprep.subr.mxu0 0.0
          %1598 = vmatpush1.msra.mxu0 0.0
          %1599 = vmatprep.subr.mxu0 0.0
          %1600 = vmatpush1.msra.mxu0 0.0
          %1601 = vmatprep.subr.mxu0 0.0
          %1602 = vmatpush1.msra.mxu0 0.0
          %1603 = vmatprep.subr.mxu0 0.0
          %1604 = vmatpush1.msra.mxu0 0.0
          %1605 = vmatprep.subr.mxu0 0.0
          %1606 = vmatpush1.msra.mxu0 0.0
          %1607 = vmatprep.subr.mxu0 0.0
          %1608 = vmatpush1.msra.mxu0 0.0
          %1609 = vmatprep.subr.mxu0 0.0
          %1610 = vmatpush1.msra.mxu0 0.0
          %1611 = vmatprep.subr.mxu0 0.0
          %1612 = vmatpush1.msra.mxu0 0.0
          %1613 = vmatprep.subr.mxu0 0.0
          %1614 = vmatpush1.msra.mxu0 0.0
          %1615 = vmatprep.subr.mxu0 0.0
          %1616 = vmatpush1.msra.mxu0 0.0
          %1617 = vmatprep.subr.mxu0 0.0
          %1618 = vmatpush1.msra.mxu0 0.0
          %1619 = vmatprep.subr.mxu0 0.0
          %1620 = vmatpush1.msra.mxu0 0.0
          %1621 = vmatprep.subr.mxu0 0.0
          %1622 = vmatpush1.msra.mxu0 0.0
          %1623 = vmatprep.subr.mxu0 0.0
          %1624 = vmatpush1.msra.mxu0 0.0
          %1625 = vmatprep.mubr.f32.mxu0 0.0
          %1626 = vmatmul.mubr.f32.gmra.mrb[0].mxu0 %v1559
          %v1627 = vpop.f32.mrb[0].mxu0
          %v1628 = vadd.f32 0.0, %v1627
          %v1629 = vpop.f32.mrb[0].mxu0
          %1630 = vdwg.mxu0
          %v1631 = vcombine.low %v1409, %v1555
          %v1632 = vcombine.high %v1409, %v1555
          %v1634 = vunpack.c.l.s4 1983009808
          %v1635 = vunpack.c.0.s8 %v1634
          %v1636 = vlaneseq
          %v1637 = vshrl.u32 %v1636, 7
          %v1638 = vsub.s32 %v1635, %v1637
          %v1639 = vrot.slane %v1631, %v1638
          %v1641 = vunpack.c.l.s4 1983009808
          %v1642 = vunpack.c.0.s8 %v1641
          %v1643 = vlaneseq
          %v1644 = vshrl.u32 %v1643, 7
          %v1645 = vsub.s32 %v1642, %v1644
          %v1646 = vrot.slane %v1632, %v1645
          %v1647 = vcombine.low %v1482, %v1628
          %v1648 = vcombine.high %v1482, %v1628
          %v1650 = vunpack.c.l.s4 1983009808
          %v1651 = vunpack.c.0.s8 %v1650
          %v1652 = vlaneseq
          %v1653 = vshrl.u32 %v1652, 7
          %v1654 = vsub.s32 %v1651, %v1653
          %v1655 = vrot.slane %v1647, %v1654
          %v1657 = vunpack.c.l.s4 1983009808
          %v1658 = vunpack.c.0.s8 %v1657
          %v1659 = vlaneseq
          %v1660 = vshrl.u32 %v1659, 7
          %v1661 = vsub.s32 %v1658, %v1660
          %v1662 = vrot.slane %v1648, %v1661
          %v1663 = vcombine.low %v1639, %v1655
          %v1664 = vcombine.high %v1639, %v1655
          %v1666 = vunpack.c.l.s4 1934713408
          %v1667 = vunpack.c.0.s8 %v1666
          %v1668 = vlaneseq
          %v1669 = vshrl.u32 %v1668, 7
          %v1670 = vsub.s32 %v1667, %v1669
          %v1671 = vrot.slane %v1663, %v1670
          %v1673 = vunpack.c.l.s4 1934713408
          %v1674 = vunpack.c.0.s8 %v1673
          %v1675 = vlaneseq
          %v1676 = vshrl.u32 %v1675, 7
          %v1677 = vsub.s32 %v1674, %v1676
          %v1678 = vrot.slane %v1664, %v1677
          %v1679 = vcombine.low %v1646, %v1662
          %v1680 = vcombine.high %v1646, %v1662
          %v1682 = vunpack.c.l.s4 1934713408
          %v1683 = vunpack.c.0.s8 %v1682
          %v1684 = vlaneseq
          %v1685 = vshrl.u32 %v1684, 7
          %v1686 = vsub.s32 %v1683, %v1685
          %v1687 = vrot.slane %v1679, %v1686
          %v1689 = vunpack.c.l.s4 1934713408
          %v1690 = vunpack.c.0.s8 %v1689
          %v1691 = vlaneseq
          %v1692 = vshrl.u32 %v1691, 7
          %v1693 = vsub.s32 %v1690, %v1692
          %v1694 = vrot.slane %v1680, %v1693
          %v1695 = vcombine.high %v1671, 0.0
          %v1696 = vcombine.high %v1678, 0.0
          %v1697 = vcombine.high %v1687, 0.0
          %v1698 = vcombine.high %v1694, 0.0
          %v1699 = vcombine.low %v1671, %v1678
          %v1701 = vunpack.c.l.s4 1983009808
          %v1702 = vunpack.c.0.s8 %v1701
          %v1703 = vlaneseq
          %v1704 = vshrl.u32 %v1703, 7
          %v1705 = vsub.s32 %v1702, %v1704
          %v1706 = vrot.slane %v1699, %v1705
          %v1707 = vcombine.low %v1695, %v1696
          %v1709 = vunpack.c.l.s4 1983009808
          %v1710 = vunpack.c.0.s8 %v1709
          %v1711 = vlaneseq
          %v1712 = vshrl.u32 %v1711, 7
          %v1713 = vsub.s32 %v1710, %v1712
          %v1714 = vrot.slane %v1707, %v1713
          %v1715 = vcombine.low %v1687, %v1694
          %v1717 = vunpack.c.l.s4 1983009808
          %v1718 = vunpack.c.0.s8 %v1717
          %v1719 = vlaneseq
          %v1720 = vshrl.u32 %v1719, 7
          %v1721 = vsub.s32 %v1718, %v1720
          %v1722 = vrot.slane %v1715, %v1721
          %v1723 = vcombine.low %v1697, %v1698
          %v1725 = vunpack.c.l.s4 1983009808
          %v1726 = vunpack.c.0.s8 %v1725
          %v1727 = vlaneseq
          %v1728 = vshrl.u32 %v1727, 7
          %v1729 = vsub.s32 %v1726, %v1728
          %v1730 = vrot.slane %v1723, %v1729
          %v1731 = vcombine.low %v1706, %v1714
          %v1732 = vcombine.high %v1706, %v1714
          %v1734 = vunpack.c.l.s4 1934713408
          %v1735 = vunpack.c.0.s8 %v1734
          %v1736 = vlaneseq
          %v1737 = vshrl.u32 %v1736, 7
          %v1738 = vsub.s32 %v1735, %v1737
          %v1739 = vrot.slane %v1731, %v1738
          %v1741 = vunpack.c.l.s4 1934713408
          %v1742 = vunpack.c.0.s8 %v1741
          %v1743 = vlaneseq
          %v1744 = vshrl.u32 %v1743, 7
          %v1745 = vsub.s32 %v1742, %v1744
          %v1746 = vrot.slane %v1732, %v1745
          %v1747 = vcombine.low %v1722, %v1730
          %v1748 = vcombine.high %v1722, %v1730
          %v1750 = vunpack.c.l.s4 1934713408
          %v1751 = vunpack.c.0.s8 %v1750
          %v1752 = vlaneseq
          %v1753 = vshrl.u32 %v1752, 7
          %v1754 = vsub.s32 %v1751, %v1753
          %v1755 = vrot.slane %v1747, %v1754
          %v1757 = vunpack.c.l.s4 1934713408
          %v1758 = vunpack.c.0.s8 %v1757
          %v1759 = vlaneseq
          %v1760 = vshrl.u32 %v1759, 7
          %v1761 = vsub.s32 %v1758, %v1760
          %v1762 = vrot.slane %v1748, %v1761
          %v1763 = vcombine.low %v1739, %v1755
          %v1764 = vcombine.high %v1739, %v1755
          %v1765 = vcombine.low %v1746, %v1762
          %v1766 = vcombine.high %v1746, %v1762
          %1768 = vrot.lane.b32.xlu0 %v1764, 8
          %v1769 = vpop.permute.xlu0 %1768
          %1772 = vrot.lane.b32.xlu0 %v1765, 16
          %v1773 = vpop.permute.xlu0 %1772
          %1776 = vrot.lane.b32.xlu0 %v1766, 24
          %v1777 = vpop.permute.xlu0 %1776
          %v1779 = vsel %vm990, %v1763, %v1769
          %vm1780 = vcmask 130048
          %v1781 = vsel %vm1780, %v1779, %v1773
          %vm1782 = vcmask 195584
          %v1783 = vsel %vm1782, %v1781, %v1777
          %s1784 = scalar_lea.vmem %s3, %s461
          %v1785 = vld [vmem:[%s1784] sm:$0xff]
          %v1786 = vld [vmem:[%s1784 + $0x8] sm:$0xff]
          %v1787 = vld [vmem:[%s1784 + $0x10] sm:$0xff]
          %v1788 = vld [vmem:[%s1784 + $0x18] sm:$0xff]
          %s1789 = scalar_lea.vmem %s4, %s431
          %v1790 = vld [vmem:[%s1789] sm:$0x1]
          %v1792 = vlaneseq
          %v1793 = vshrl.u32 %v1792, 7
          %v1794 = vsub.s32 0, %v1793
          %v1795 = vrot.slane %v1790, %v1794
          %v1798 = vsel %vm439, %v1783, 0
          %1800 = vmatprep.subr.mxu0 0.0
          %1801 = vmatpush1.msra.mxu0 %v1785
          %1802 = vmatprep.subr.mxu0 0.0
          %1803 = vmatpush1.msra.mxu0 %v1786
          %1804 = vmatprep.subr.mxu0 0.0
          %1805 = vmatpush1.msra.mxu0 %v1787
          %1806 = vmatprep.subr.mxu0 0.0
          %1807 = vmatpush1.msra.mxu0 %v1788
          %1808 = vmatprep.subr.mxu0 0.0
          %1809 = vmatpush1.msra.mxu0 0.0
          %1810 = vmatprep.subr.mxu0 0.0
          %1811 = vmatpush1.msra.mxu0 0.0
          %1812 = vmatprep.subr.mxu0 0.0
          %1813 = vmatpush1.msra.mxu0 0.0
          %1814 = vmatprep.subr.mxu0 0.0
          %1815 = vmatpush1.msra.mxu0 0.0
          %1816 = vmatprep.subr.mxu0 0.0
          %1817 = vmatpush1.msra.mxu0 0.0
          %1818 = vmatprep.subr.mxu0 0.0
          %1819 = vmatpush1.msra.mxu0 0.0
          %1820 = vmatprep.subr.mxu0 0.0
          %1821 = vmatpush1.msra.mxu0 0.0
          %1822 = vmatprep.subr.mxu0 0.0
          %1823 = vmatpush1.msra.mxu0 0.0
          %1824 = vmatprep.subr.mxu0 0.0
          %1825 = vmatpush1.msra.mxu0 0.0
          %1826 = vmatprep.subr.mxu0 0.0
          %1827 = vmatpush1.msra.mxu0 0.0
          %1828 = vmatprep.subr.mxu0 0.0
          %1829 = vmatpush1.msra.mxu0 0.0
          %1830 = vmatprep.subr.mxu0 0.0
          %1831 = vmatpush1.msra.mxu0 0.0
          %1832 = vmatprep.subr.mxu0 0.0
          %1833 = vmatpush1.msra.mxu0 0.0
          %1834 = vmatprep.subr.mxu0 0.0
          %1835 = vmatpush1.msra.mxu0 0.0
          %1836 = vmatprep.subr.mxu0 0.0
          %1837 = vmatpush1.msra.mxu0 0.0
          %1838 = vmatprep.subr.mxu0 0.0
          %1839 = vmatpush1.msra.mxu0 0.0
          %1840 = vmatprep.subr.mxu0 0.0
          %1841 = vmatpush1.msra.mxu0 0.0
          %1842 = vmatprep.subr.mxu0 0.0
          %1843 = vmatpush1.msra.mxu0 0.0
          %1844 = vmatprep.subr.mxu0 0.0
          %1845 = vmatpush1.msra.mxu0 0.0
          %1846 = vmatprep.subr.mxu0 0.0
          %1847 = vmatpush1.msra.mxu0 0.0
          %1848 = vmatprep.subr.mxu0 0.0
          %1849 = vmatpush1.msra.mxu0 0.0
          %1850 = vmatprep.subr.mxu0 0.0
          %1851 = vmatpush1.msra.mxu0 0.0
          %1852 = vmatprep.subr.mxu0 0.0
          %1853 = vmatpush1.msra.mxu0 0.0
          %1854 = vmatprep.subr.mxu0 0.0
          %1855 = vmatpush1.msra.mxu0 0.0
          %1856 = vmatprep.subr.mxu0 0.0
          %1857 = vmatpush1.msra.mxu0 0.0
          %1858 = vmatprep.subr.mxu0 0.0
          %1859 = vmatpush1.msra.mxu0 0.0
          %1860 = vmatprep.subr.mxu0 0.0
          %1861 = vmatpush1.msra.mxu0 0.0
          %1862 = vmatprep.subr.mxu0 0.0
          %1863 = vmatpush1.msra.mxu0 0.0
          %1864 = vmatprep.mubr.f32.mxu0 0.0
          %1865 = vmatmul.mubr.f32.gmra.mrb[0].mxu0 %v1798
          %v1866 = vpop.f32.mrb[0].mxu0
          %v1867 = vadd.f32 %v1795, %v1866
          %v1868 = vpop.f32.mrb[0].mxu0
          %1869 = vdwg.mxu0
          %v1870 = vadd.f32 %v436, %v1867
          %s1871 = scalar_lea.vmem %s6, %s431
          %v1872 = vld [vmem:[%s1871] sm:$0x1]
          %v1873 = vsel %vm439, %v1870, 0.0
          %1874 = vadd.xlane.f32.xlu0 %v1873
          %v1875 = vpop.xlane.xlu0 %1874
          %v1876 = vmul.f32 %v1875, %v443
          %v1877 = vsub.f32 %v1870, %v1876
          %v1878 = vmul.f32 %v1877, %v1877
          %v1879 = vsel %vm439, %v1878, 0.0
          %1880 = vadd.xlane.f32.xlu0 %v1879
          %v1881 = vpop.xlane.xlu0 %1880
          %v1882 = vmul.f32 %v1881, %v443
          %v1883 = vadd.f32 %v1882, 1e-05
          %v1884 = vrsqrt.pop %v1883
          %v1885 = vmul.f32 %v1877, %v1884
          %v1887 = vlaneseq
          %v1888 = vshrl.u32 %v1887, 7
          %v1889 = vsub.s32 0, %v1888
          %v1890 = vrot.slane %v1872, %v1889
          %v1892 = vmul.f32 %v1885, %v1890
          %s1893 = scalar_lea.vmem %s7, %s461
          %v1894 = vld [vmem:[%s1893] sm:$0xff]
          %v1895 = vld [vmem:[%s1893 + $0x8] sm:$0xff]
          %v1896 = vld [vmem:[%s1893 + $0x10] sm:$0xff]
          %v1897 = vld [vmem:[%s1893 + $0x18] sm:$0xff]
          %s1898 = scalar_lea.vmem %s8, %s431
          %v1899 = vld [vmem:[%s1898] sm:$0x1]
          %v1901 = vlaneseq
          %v1902 = vshrl.u32 %v1901, 7
          %v1903 = vsub.s32 0, %v1902
          %v1904 = vrot.slane %v1899, %v1903
          %v1907 = vsel %vm439, %v1892, 0
          %1909 = vmatprep.subr.mxu0 0.0
          %1910 = vmatpush1.msra.mxu0 %v1894
          %1911 = vmatprep.subr.mxu0 0.0
          %1912 = vmatpush1.msra.mxu0 %v1895
          %1913 = vmatprep.subr.mxu0 0.0
          %1914 = vmatpush1.msra.mxu0 %v1896
          %1915 = vmatprep.subr.mxu0 0.0
          %1916 = vmatpush1.msra.mxu0 %v1897
          %1917 = vmatprep.subr.mxu0 0.0
          %1918 = vmatpush1.msra.mxu0 0.0
          %1919 = vmatprep.subr.mxu0 0.0
          %1920 = vmatpush1.msra.mxu0 0.0
          %1921 = vmatprep.subr.mxu0 0.0
          %1922 = vmatpush1.msra.mxu0 0.0
          %1923 = vmatprep.subr.mxu0 0.0
          %1924 = vmatpush1.msra.mxu0 0.0
          %1925 = vmatprep.subr.mxu0 0.0
          %1926 = vmatpush1.msra.mxu0 0.0
          %1927 = vmatprep.subr.mxu0 0.0
          %1928 = vmatpush1.msra.mxu0 0.0
          %1929 = vmatprep.subr.mxu0 0.0
          %1930 = vmatpush1.msra.mxu0 0.0
          %1931 = vmatprep.subr.mxu0 0.0
          %1932 = vmatpush1.msra.mxu0 0.0
          %1933 = vmatprep.subr.mxu0 0.0
          %1934 = vmatpush1.msra.mxu0 0.0
          %1935 = vmatprep.subr.mxu0 0.0
          %1936 = vmatpush1.msra.mxu0 0.0
          %1937 = vmatprep.subr.mxu0 0.0
          %1938 = vmatpush1.msra.mxu0 0.0
          %1939 = vmatprep.subr.mxu0 0.0
          %1940 = vmatpush1.msra.mxu0 0.0
          %1941 = vmatprep.subr.mxu0 0.0
          %1942 = vmatpush1.msra.mxu0 0.0
          %1943 = vmatprep.subr.mxu0 0.0
          %1944 = vmatpush1.msra.mxu0 0.0
          %1945 = vmatprep.subr.mxu0 0.0
          %1946 = vmatpush1.msra.mxu0 0.0
          %1947 = vmatprep.subr.mxu0 0.0
          %1948 = vmatpush1.msra.mxu0 0.0
          %1949 = vmatprep.subr.mxu0 0.0
          %1950 = vmatpush1.msra.mxu0 0.0
          %1951 = vmatprep.subr.mxu0 0.0
          %1952 = vmatpush1.msra.mxu0 0.0
          %1953 = vmatprep.subr.mxu0 0.0
          %1954 = vmatpush1.msra.mxu0 0.0
          %1955 = vmatprep.subr.mxu0 0.0
          %1956 = vmatpush1.msra.mxu0 0.0
          %1957 = vmatprep.subr.mxu0 0.0
          %1958 = vmatpush1.msra.mxu0 0.0
          %1959 = vmatprep.subr.mxu0 0.0
          %1960 = vmatpush1.msra.mxu0 0.0
          %1961 = vmatprep.subr.mxu0 0.0
          %1962 = vmatpush1.msra.mxu0 0.0
          %1963 = vmatprep.subr.mxu0 0.0
          %1964 = vmatpush1.msra.mxu0 0.0
          %1965 = vmatprep.subr.mxu0 0.0
          %1966 = vmatpush1.msra.mxu0 0.0
          %1967 = vmatprep.subr.mxu0 0.0
          %1968 = vmatpush1.msra.mxu0 0.0
          %1969 = vmatprep.subr.mxu0 0.0
          %1970 = vmatpush1.msra.mxu0 0.0
          %1971 = vmatprep.subr.mxu0 0.0
          %1972 = vmatpush1.msra.mxu0 0.0
          %1973 = vmatprep.mubr.f32.mxu0 0.0
          %1974 = vmatmul.mubr.f32.gmra.mrb[0].mxu0 %v1907
          %v1975 = vpop.f32.mrb[0].mxu0
          %v1976 = vadd.f32 %v1904, %v1975
          %v1977 = vpop.f32.mrb[0].mxu0
          %1978 = vdwg.mxu0
          %v1979 = vmax.f32 %v1976, 0.0
          %s1980 = smul.u32 %s431, 64
          %s1981 = scalar_lea.vmem %s9, %s1980
          %v1982 = vld [vmem:[%s1981] sm:$0xff]
          %v1983 = vld [vmem:[%s1981 + $0x8] sm:$0xff]
          %v1984 = vld [vmem:[%s1981 + $0x10] sm:$0xff]
          %v1985 = vld [vmem:[%s1981 + $0x18] sm:$0xff]
          %v1986 = vld [vmem:[%s1981 + $0x20] sm:$0xff]
          %v1987 = vld [vmem:[%s1981 + $0x28] sm:$0xff]
          %v1988 = vld [vmem:[%s1981 + $0x30] sm:$0xff]
          %v1989 = vld [vmem:[%s1981 + $0x38] sm:$0xff]
          %s1990 = scalar_lea.vmem %s10, %s431
          %v1991 = vld [vmem:[%s1990] sm:$0x1]
          %v1993 = vlaneseq
          %v1994 = vshrl.u32 %v1993, 7
          %v1995 = vsub.s32 0, %v1994
          %v1996 = vrot.slane %v1991, %v1995
          %vm1998 = vcmask 523264
          %v2000 = vsel %vm1998, %v1979, 0
          %2002 = vmatprep.subr.mxu0 0.0
          %2003 = vmatpush1.msra.mxu0 %v1982
          %2004 = vmatprep.subr.mxu0 0.0
          %2005 = vmatpush1.msra.mxu0 %v1983
          %2006 = vmatprep.subr.mxu0 0.0
          %2007 = vmatpush1.msra.mxu0 %v1984
          %2008 = vmatprep.subr.mxu0 0.0
          %2009 = vmatpush1.msra.mxu0 %v1985
          %2010 = vmatprep.subr.mxu0 0.0
          %2011 = vmatpush1.msra.mxu0 %v1986
          %2012 = vmatprep.subr.mxu0 0.0
          %2013 = vmatpush1.msra.mxu0 %v1987
          %2014 = vmatprep.subr.mxu0 0.0
          %2015 = vmatpush1.msra.mxu0 %v1988
          %2016 = vmatprep.subr.mxu0 0.0
          %2017 = vmatpush1.msra.mxu0 %v1989
          %2018 = vmatprep.subr.mxu0 0.0
          %2019 = vmatpush1.msra.mxu0 0.0
          %2020 = vmatprep.subr.mxu0 0.0
          %2021 = vmatpush1.msra.mxu0 0.0
          %2022 = vmatprep.subr.mxu0 0.0
          %2023 = vmatpush1.msra.mxu0 0.0
          %2024 = vmatprep.subr.mxu0 0.0
          %2025 = vmatpush1.msra.mxu0 0.0
          %2026 = vmatprep.subr.mxu0 0.0
          %2027 = vmatpush1.msra.mxu0 0.0
          %2028 = vmatprep.subr.mxu0 0.0
          %2029 = vmatpush1.msra.mxu0 0.0
          %2030 = vmatprep.subr.mxu0 0.0
          %2031 = vmatpush1.msra.mxu0 0.0
          %2032 = vmatprep.subr.mxu0 0.0
          %2033 = vmatpush1.msra.mxu0 0.0
          %2034 = vmatprep.subr.mxu0 0.0
          %2035 = vmatpush1.msra.mxu0 0.0
          %2036 = vmatprep.subr.mxu0 0.0
          %2037 = vmatpush1.msra.mxu0 0.0
          %2038 = vmatprep.subr.mxu0 0.0
          %2039 = vmatpush1.msra.mxu0 0.0
          %2040 = vmatprep.subr.mxu0 0.0
          %2041 = vmatpush1.msra.mxu0 0.0
          %2042 = vmatprep.subr.mxu0 0.0
          %2043 = vmatpush1.msra.mxu0 0.0
          %2044 = vmatprep.subr.mxu0 0.0
          %2045 = vmatpush1.msra.mxu0 0.0
          %2046 = vmatprep.subr.mxu0 0.0
          %2047 = vmatpush1.msra.mxu0 0.0
          %2048 = vmatprep.subr.mxu0 0.0
          %2049 = vmatpush1.msra.mxu0 0.0
          %2050 = vmatprep.subr.mxu0 0.0
          %2051 = vmatpush1.msra.mxu0 0.0
          %2052 = vmatprep.subr.mxu0 0.0
          %2053 = vmatpush1.msra.mxu0 0.0
          %2054 = vmatprep.subr.mxu0 0.0
          %2055 = vmatpush1.msra.mxu0 0.0
          %2056 = vmatprep.subr.mxu0 0.0
          %2057 = vmatpush1.msra.mxu0 0.0
          %2058 = vmatprep.subr.mxu0 0.0
          %2059 = vmatpush1.msra.mxu0 0.0
          %2060 = vmatprep.subr.mxu0 0.0
          %2061 = vmatpush1.msra.mxu0 0.0
          %2062 = vmatprep.subr.mxu0 0.0
          %2063 = vmatpush1.msra.mxu0 0.0
          %2064 = vmatprep.subr.mxu0 0.0
          %2065 = vmatpush1.msra.mxu0 0.0
          %2066 = vmatprep.mubr.f32.mxu0 0.0
          %2067 = vmatmul.mubr.f32.gmra.mrb[0].mxu0 %v2000
          %v2068 = vpop.f32.mrb[0].mxu0
          %v2069 = vadd.f32 %v1996, %v2068
          %v2070 = vpop.f32.mrb[0].mxu0
          %2071 = vdwg.mxu0
          %v2072 = vadd.f32 %v1870, %v2069
        $region77: #{tpu_custom_call.1} parent=67 // loop_footer
          %s435 = sadd.s32 1, %s431
        $region78: #{tpu_custom_call.1} parent=67 // loop_footer_branch
          %430 = sbr.rel target = $region74
        $region79: #{tpu_custom_call.1} parent=67 // loop_exit
          _
        %v2073 = vld [vmem:[%s11] sm:$0x1]
        %vm2074 = vcmask 261120
        %v2075 = vsel %vm2074, %v436, 0.0
        %2076 = vadd.xlane.f32.xlu0 %v2075
        %v2077 = vpop.xlane.xlu0 %2076
        %v2078 = vrcp.pop 32.0
        %v2079 = vmul.f32 %v2077, %v2078
        %v2080 = vsub.f32 %v436, %v2079
        %v2081 = vmul.f32 %v2080, %v2080
        %v2082 = vsel %vm2074, %v2081, 0.0
        %2083 = vadd.xlane.f32.xlu0 %v2082
        %v2084 = vpop.xlane.xlu0 %2083
        %v2085 = vmul.f32 %v2084, %v2078
        %v2086 = vadd.f32 %v2085, 1e-05
        %v2087 = vrsqrt.pop %v2086
        %v2088 = vmul.f32 %v2080, %v2087
        %v2090 = vlaneseq
        %v2091 = vshrl.u32 %v2090, 7
        %v2092 = vsub.s32 0, %v2091
        %v2093 = vrot.slane %v2073, %v2092
        %v2095 = vmul.f32 %v2088, %v2093
        %2096 = vst.msk [vmem:[%s428] sm:$0xff] %vm2074, %v2095
        %s2097 = sand.u32 %s294, 1
        %s2098 = scalar_lea.sflag [#allocation4], %s2097
        %s2099 = sand.u32 %s294, 1
        %s2100 = smul.addr %s2099, 8
        %s2101 = scalar_lea.vmem [#allocation5], %s2100
        // Predicated region
        $region80: #{tpu_custom_call.1} parent=67 // pred_check
          %p2102 = pneg %p304
        $region81: #{tpu_custom_call.1} parent=67 // pred_check_branch
          %2104 = sbr.rel (%p2102) target = $region83
        $region82: #{tpu_custom_call.1} parent=67 // pred_region
          %s2106 = ssub.s32 128, 128
          %2107 = vsyncadd %s2098, %s2106
          %s2108 = smul.addr %s29, 128
          %s2109 = scalar_lea.hbm %s12, %s2108
          %s2111 = sshll.u32 %s2101, 4
          %s2112 = int_to_ptr.vmem [resolvable:$true] %s2111
          %2114 = dma.vmem_to_hbm [thread:$0]  %s2112, 128, %s2109, %s2098
        $region83: #{tpu_custom_call.1} parent=67 // pred_fallthru
          _
      $region68: #{tpu_custom_call.1} parent=5 // pred_fallthru
        _
      %p2115 = scmp.le.s32.totalorder 2, %s24
      // Predicated region
      $region84: #{tpu_custom_call.1} parent=5 // pred_check
        %p2116 = pneg %p2115
      $region85: #{tpu_custom_call.1} parent=5 // pred_check_branch
        %2118 = sbr.rel (%p2116) target = $region87
      $region86: #{tpu_custom_call.1} parent=5 // pred_region
        %s2119 = ssub.s32 %s24, 2
        // Predicated region
        $region88: #{tpu_custom_call.1} parent=86 // pred_check
          %p2120 = pneg %p310
        $region89: #{tpu_custom_call.1} parent=86 // pred_check_branch
          %2122 = sbr.rel (%p2120) target = $region91
        $region90: #{tpu_custom_call.1} parent=86 // pred_region
          %s2123 = sand.u32 %s295, 1
          %s2124 = scalar_lea.sflag [#allocation4], %s2123
          %s2125 = sand.u32 %s295, 1
          %s2126 = smul.addr %s2125, 8
          %s2127 = scalar_lea.vmem [#allocation5], %s2126
          %2128 = dma.done %s2124, 128
        $region91: #{tpu_custom_call.1} parent=86 // pred_fallthru
          _
      $region87: #{tpu_custom_call.1} parent=5 // pred_fallthru
        _
    $region6: #{tpu_custom_call.1} parent=1 // loop_footer
      %s28 = sadd.s32 1, %s24
    $region7: #{tpu_custom_call.1} parent=1 // loop_footer_branch
      %23 = sbr.rel target = $region3
    $region8: #{tpu_custom_call.1} parent=1 // loop_exit
      _
    %2129 = vsyncpa [#allocation3], 1
    %s2130 = scalar_lea.sflag [#allocation3], 1
    %2131 = vsyncpa %s2130, 1
    %2132 = vsyncpa [#allocation4], 1
    %s2133 = scalar_lea.sflag [#allocation4], 1
    %2134 = vsyncpa %s2133, 1

</llo_original>
